<compile_context>
chip_gen: v7x
topology: tpu7x:2x2x1
jax: 0.10.0
libtpu: 0.0.40
codegen_flags: <defaults>
</compile_context>

<pallas_src>
import functools

import jax
import jax.numpy as jnp
from jax import lax
from jax.experimental import pallas as pl
from jax.experimental.pallas import tpu as pltpu

# activation modes for the fused conv kernels
ACT_NONE, ACT_LEAKY, ACT_RELU = 0, 1, 2
LEAKY_SLOPE = 0.01  # PyTorch nn.LeakyReLU default
BN_EPS = 1e-5

MAX_TM = 1024                     # output-row tile for the 1x1 / fallback matmul
MAX_TN = 512                      # output-channel tile (all couts <= 256)
MAX_THW = 4096                    # spatial rows per MGA tile
VMEM_LIMIT = 48 * 1024 * 1024     # explicit scoped-VMEM limit (safe on v5e/v6e/v7x)
CONV_VMEM_BUDGET = 14 * 1024 * 1024  # budget for the implicit-conv working set


def _round_up(v, m):
    return ((v + m - 1) // m) * m


def _pick_tile(dim, max_tile, mult):
    """Pick a block size for one array dim. Returns (tile, padded_dim)."""
    if dim <= max_tile:
        return dim, dim
    t = (max_tile // mult) * mult
    while t >= mult:
        if dim % t == 0:
            return t, dim
        t -= mult
    t = (max_tile // mult) * mult
    return t, _round_up(dim, t)


def _affine(bn, cout):
    if bn is None:
        return jnp.ones((1, cout), jnp.float32), jnp.zeros((1, cout), jnp.float32)
    return bn["scale"], bn["shift"]


# --------------------------------------------------------------------------
# Pallas kernel 1: fused multi-input matmul (no K split)
#   acc = sum_i (x_i @ w_i) + bias -> act -> scale*y + shift
# Used for 1x1 convs, concat-fused 1x1 convs, and the rare im2col fallback.
# --------------------------------------------------------------------------
def _matmul_fused_kernel(*refs, n_in, act_mode):
    x_refs = refs[:n_in]
    w_refs = refs[n_in:2 * n_in]
    b_ref, s_ref, t_ref, o_ref = refs[2 * n_in:2 * n_in + 4]
    acc = jnp.dot(x_refs[0][...], w_refs[0][...], preferred_element_type=jnp.float32)
    for idx in range(1, n_in):
        acc = acc + jnp.dot(x_refs[idx][...], w_refs[idx][...],
                            preferred_element_type=jnp.float32)
    acc = acc + b_ref[...]
    if act_mode == ACT_LEAKY:
        acc = jnp.where(acc > 0, acc, LEAKY_SLOPE * acc)
    elif act_mode == ACT_RELU:
        acc = jnp.maximum(acc, 0.0)
    o_ref[...] = (acc * s_ref[...] + t_ref[...]).astype(o_ref.dtype)


@functools.partial(jax.jit, static_argnames=("act_mode", "out_dtype"))
def pallas_matmul_fused(xs, ws, b, scale, shift, *, act_mode=ACT_NONE,
                        out_dtype=jnp.bfloat16):
    """xs: tuple of [M, K_i];  ws: tuple of [K_i, N]."""
    xs = tuple(x.astype(jnp.bfloat16) for x in xs)
    ws = tuple(w.astype(jnp.bfloat16) for w in ws)
    n_in = len(xs)
    M = xs[0].shape[0]
    N = ws[0].shape[1]
    tm, Mp = _pick_tile(max(M, 16), MAX_TM, 16)
    tn, Np = _pick_tile(N, MAX_TN, 128)
    if Mp != M:
        xs = tuple(jnp.zeros((Mp, x.shape[1]), x.dtype).at[:M].set(x) for x in xs)
    if Np != N:
        ws = tuple(jnp.zeros((w.shape[0], Np), w.dtype).at[:, :N].set(w) for w in ws)
        b = jnp.zeros((1, Np), b.dtype).at[:, :N].set(b)
        scale = jnp.ones((1, Np), scale.dtype).at[:, :N].set(scale)
        shift = jnp.zeros((1, Np), shift.dtype).at[:, :N].set(shift)

    grid = (Mp // tm, Np // tn)
    in_specs = (
        [pl.BlockSpec((tm, x.shape[1]), lambda i, j: (i, 0)) for x in xs]
        + [pl.BlockSpec((w.shape[0], tn), lambda i, j: (0, j)) for w in ws]
        + [pl.BlockSpec((1, tn), lambda i, j: (0, j))] * 3)
    flops = sum(2 * Mp * x.shape[1] * Np for x in xs)
    bytes_acc = (sum(Mp * x.shape[1] * 2 for x in xs)
                 + sum(w.shape[0] * Np * 2 for w in ws)
                 + Mp * Np * jnp.dtype(out_dtype).itemsize)
    out = pl.pallas_call(
        functools.partial(_matmul_fused_kernel, n_in=n_in, act_mode=act_mode),
        out_shape=jax.ShapeDtypeStruct((Mp, Np), out_dtype),
        grid=grid,
        in_specs=in_specs,
        out_specs=pl.BlockSpec((tm, tn), lambda i, j: (i, j)),
        compiler_params=pltpu.CompilerParams(
            dimension_semantics=("parallel", "parallel"),
            vmem_limit_bytes=VMEM_LIMIT),
        cost_estimate=pl.CostEstimate(flops=flops, transcendentals=0,
                                      bytes_accessed=bytes_acc),
    )(*xs, *ws, b, scale, shift)
    if Mp != M or Np != N:
        out = out[:M, :N]
    return out


# --------------------------------------------------------------------------
# Pallas kernel 2: implicit-im2col KxK conv (manual DMA, no patches in HBM)
#   grid = (batch, output-row blocks); per block the kernel issues kw DMAs
#   (one per column tap, with the (kh-1)*dil row halo) from the padded HBM
#   activation and accumulates the kh*kw shifted-slice matmuls in VMEM.
# --------------------------------------------------------------------------
def _conv_implicit_kernel(xpad_ref, w_ref, b_ref, s_ref, t_ref, o_ref,
                          xbuf, acc_ref, sems, *, kh, kw, dil, th, hp, wo, act_mode):
    n = pl.program_id(0)
    i = pl.program_id(1)
    th_tot = th + (kh - 1) * dil
    r0 = n * hp + i * th

    # issue all column-tap DMAs up front so later taps overlap with compute
    copies = []
    for kj in range(kw):
        cp = pltpu.make_async_copy(
            xpad_ref.at[pl.ds(r0, th_tot), pl.ds(kj * dil, wo), :],
            xbuf.at[kj],
            sems.at[kj])
        cp.start()
        copies.append(cp)

    acc_ref[...] = jnp.zeros_like(acc_ref)
    for kj in range(kw):
        copies[kj].wait()
        for ki in range(kh):
            lhs = xbuf[kj, ki * dil:ki * dil + th]          # (th, wo, C) bf16
            lhs = lhs.reshape(th * wo, lhs.shape[-1])       # layout-free (wo % 16 == 0)
            acc_ref[...] += jnp.dot(lhs, w_ref[ki * kw + kj],
                                    preferred_element_type=jnp.float32)

    acc = acc_ref[...] + b_ref[...]
    if act_mode == ACT_LEAKY:
        acc = jnp.where(acc > 0, acc, LEAKY_SLOPE * acc)
    elif act_mode == ACT_RELU:
        acc = jnp.maximum(acc, 0.0)
    o_ref[0] = (acc * s_ref[...] + t_ref[...]).astype(o_ref.dtype)


def _pick_conv_rows(ho, wo, c, cout, kh, kw, dil):
    """Output rows per block so the VMEM working set stays under budget."""
    c_pad = _round_up(c, 128)
    cout_pad = _round_up(cout, 128)
    row_bytes = kw * wo * c_pad * 2 + wo * cout_pad * 4 + 2 * wo * cout_pad * 2
    halo_bytes = kw * (kh - 1) * dil * wo * c_pad * 2
    cap = max(1, (CONV_VMEM_BUDGET - halo_bytes) // row_bytes)
    th = 1
    for d in range(1, ho + 1):
        if ho % d == 0 and d <= cap:
            th = d
    return th


@functools.partial(jax.jit, static_argnames=("n_img", "hp", "ho", "wo", "c", "cout",
                                             "kh", "kw", "dil", "th", "act_mode",
                                             "out_dtype"))
def pallas_conv_implicit(xflat, w3, b, scale, shift, *, n_img, hp, ho, wo, c, cout,
                         kh, kw, dil, th, act_mode, out_dtype=jnp.bfloat16):
    """xflat: [n_img*hp, wp, c] zero-padded bf16 activation (kept in HBM)."""
    kt = kh * kw
    wp = xflat.shape[1]
    th_tot = th + (kh - 1) * dil
    out = pl.pallas_call(
        functools.partial(_conv_implicit_kernel, kh=kh, kw=kw, dil=dil, th=th,
                          hp=hp, wo=wo, act_mode=act_mode),
        out_shape=jax.ShapeDtypeStruct((n_img, ho * wo, cout), out_dtype),
        grid=(n_img, ho // th),
        in_specs=[
            pl.BlockSpec(memory_space=pl.ANY),                       # padded activation (HBM)
            pl.BlockSpec((kt, c, cout), lambda n, i: (0, 0, 0)),     # weights (resident)
            pl.BlockSpec((1, cout), lambda n, i: (0, 0)),
            pl.BlockSpec((1, cout), lambda n, i: (0, 0)),
            pl.BlockSpec((1, cout), lambda n, i: (0, 0)),
        ],
        out_specs=pl.BlockSpec((1, th * wo, cout), lambda n, i: (n, i, 0)),
        scratch_shapes=[
            pltpu.VMEM((kw, th_tot, wo, c), jnp.bfloat16),
            pltpu.VMEM((th * wo, cout), jnp.float32),
            pltpu.SemaphoreType.DMA((kw,)),
        ],
        compiler_params=pltpu.CompilerParams(
            dimension_semantics=("parallel", "parallel"),
            vmem_limit_bytes=VMEM_LIMIT),
        cost_estimate=pl.CostEstimate(
            flops=2 * n_img * ho * wo * c * cout * kt,
            transcendentals=0,
            bytes_accessed=n_img * hp * wp * c * 2 * kw + n_img * ho * wo * cout * 2),
    )(xflat, w3, b, scale, shift)
    return out


# --------------------------------------------------------------------------
# Pallas kernels 3a/3b: MGA attention (encoder_attention_module_MGA_tmc)
#   pass a: per-pixel sigmoid gate (stored) + running spatial sum of gate*img
#   (tiny CxC channel conv + softmax done in JAX on [B, C])
#   pass b: apply stored gate + channel weights + residual (no flow re-read).
# --------------------------------------------------------------------------
def _mga_gate_sum_kernel(img_ref, flow_ref, wsp_ref, bsp_ref, gate_ref, sum_ref):
    @pl.when(pl.program_id(1) == 0)
    def _init():
        sum_ref[...] = jnp.zeros_like(sum_ref)

    img = img_ref[0].astype(jnp.float32)                        # [thw, C]
    flow = flow_ref[0].astype(jnp.float32)                      # [thw, C]
    sp = jnp.sum(flow * wsp_ref[...], axis=-1, keepdims=True) + bsp_ref[...]
    sp = jax.nn.sigmoid(sp)                                     # [thw, 1]
    gate_ref[0] = sp
    sum_ref[...] += jnp.sum(sp * img, axis=0, keepdims=True)[None]


def _mga_apply_kernel(img_ref, gate_ref, fv_ref, o_ref):
    img = img_ref[0].astype(jnp.float32)
    sp = gate_ref[0]                                            # [thw, 1] f32
    o_ref[0] = (img * (sp * fv_ref[0] + 1.0)).astype(o_ref.dtype)


@jax.jit
def pallas_mga_gate_sum(img, flow, w_sp, b_sp):
    B, HW, C = img.shape
    thw, HWp = _pick_tile(HW, MAX_THW, 16)
    if HWp != HW:
        img = jnp.pad(img, ((0, 0), (0, HWp - HW), (0, 0)))
        flow = jnp.pad(flow, ((0, 0), (0, HWp - HW), (0, 0)))
    gate, sums = pl.pallas_call(
        _mga_gate_sum_kernel,
        out_shape=(jax.ShapeDtypeStruct((B, HWp, 1), jnp.float32),
                   jax.ShapeDtypeStruct((B, 1, C), jnp.float32)),
        grid=(B, HWp // thw),
        in_specs=[
            pl.BlockSpec((1, thw, C), lambda b, h: (b, h, 0)),
            pl.BlockSpec((1, thw, C), lambda b, h: (b, h, 0)),
            pl.BlockSpec((1, C), lambda b, h: (0, 0)),
            pl.BlockSpec((1, 1), lambda b, h: (0, 0)),
        ],
        out_specs=(pl.BlockSpec((1, thw, 1), lambda b, h: (b, h, 0)),
                   pl.BlockSpec((1, 1, C), lambda b, h: (b, 0, 0))),
        compiler_params=pltpu.CompilerParams(
            dimension_semantics=("parallel", "arbitrary"),
            vmem_limit_bytes=VMEM_LIMIT),
    )(img, flow, w_sp, b_sp)
    return gate[:, :HW], sums


@jax.jit
def pallas_mga_apply(img, gate, fv):
    B, HW, C = img.shape
    thw, HWp = _pick_tile(HW, MAX_THW, 16)
    if HWp != HW:
        img = jnp.pad(img, ((0, 0), (0, HWp - HW), (0, 0)))
        gate = jnp.pad(gate, ((0, 0), (0, HWp - HW), (0, 0)))
    out = pl.pallas_call(
        _mga_apply_kernel,
        out_shape=jax.ShapeDtypeStruct((B, HWp, C), jnp.bfloat16),
        grid=(B, HWp // thw),
        in_specs=[
            pl.BlockSpec((1, thw, C), lambda b, h: (b, h, 0)),
            pl.BlockSpec((1, thw, 1), lambda b, h: (b, h, 0)),
            pl.BlockSpec((1, 1, C), lambda b, h: (b, 0, 0)),
        ],
        out_specs=pl.BlockSpec((1, thw, C), lambda b, h: (b, h, 0)),
        compiler_params=pltpu.CompilerParams(
            dimension_semantics=("parallel", "parallel"),
            vmem_limit_bytes=VMEM_LIMIT),
    )(img, gate, fv)
    return out[:, :HW] if HWp != HW else out


# --------------------------------------------------------------------------
# Pallas kernel 4: fused MetaKernel
#   acc += (relu(rel_tap @ Wmlp + b) * data_tap) @ Wagg[tap]    (tap grid axis)
# --------------------------------------------------------------------------
def _meta_fused_kernel(rel_ref, data_ref, wmlp_ref, bmlp_ref, wagg_ref, bagg_ref,
                       o_ref, acc_ref):
    t = pl.program_id(1)

    @pl.when(t == 0)
    def _init():
        acc_ref[...] = jnp.zeros_like(acc_ref)

    rel = rel_ref[0]                                            # [tm, Cc] bf16
    data = data_ref[0].astype(jnp.float32)                      # [tm, Cd]
    wgt = jnp.dot(rel, wmlp_ref[...], preferred_element_type=jnp.float32) + bmlp_ref[...]
    wgt = jnp.maximum(wgt, 0.0)
    prod = (wgt * data).astype(jnp.bfloat16)
    acc_ref[...] += jnp.dot(prod, wagg_ref[0], preferred_element_type=jnp.float32)

    @pl.when(t == pl.num_programs(1) - 1)
    def _finalize():
        o_ref[...] = (acc_ref[...] + bagg_ref[...]).astype(o_ref.dtype)


@jax.jit
def pallas_meta_fused(rel3, data3, wmlp, bmlp, wagg3, bagg):
    T, M, Cc = rel3.shape
    Cd = data3.shape[-1]
    tm, Mp = _pick_tile(max(M, 16), MAX_TM, 16)
    if Mp != M:
        rel3 = jnp.pad(rel3, ((0, 0), (0, Mp - M), (0, 0)))
        data3 = jnp.pad(data3, ((0, 0), (0, Mp - M), (0, 0)))
    out = pl.pallas_call(
        _meta_fused_kernel,
        out_shape=jax.ShapeDtypeStruct((Mp, Cd), jnp.bfloat16),
        grid=(Mp // tm, T),
        in_specs=[
            pl.BlockSpec((1, tm, Cc), lambda m, t: (t, m, 0)),
            pl.BlockSpec((1, tm, Cd), lambda m, t: (t, m, 0)),
            pl.BlockSpec((Cc, Cd), lambda m, t: (0, 0)),
            pl.BlockSpec((1, Cd), lambda m, t: (0, 0)),
            pl.BlockSpec((1, Cd, Cd), lambda m, t: (t, 0, 0)),
            pl.BlockSpec((1, Cd), lambda m, t: (0, 0)),
        ],
        out_specs=pl.BlockSpec((tm, Cd), lambda m, t: (m, 0)),
        scratch_shapes=[pltpu.VMEM((tm, Cd), jnp.float32)],
        compiler_params=pltpu.CompilerParams(
            dimension_semantics=("parallel", "arbitrary"),
            vmem_limit_bytes=VMEM_LIMIT),
    )(rel3, data3, wmlp, bmlp, wagg3, bagg)
    return out[:M] if Mp != M else out


# --------------------------------------------------------------------------
# JAX glue: im2col (fallback only), tap stacking (MetaKernel), pixel-shuffle,
# avg-pool.
# --------------------------------------------------------------------------
def im2col(x, kh, kw, dil, pad):
    """x: [N,H,W,C] -> patches [N,Ho,Wo, kh*kw*C], stride 1 (fallback path)."""
    N, H, W, C = x.shape
    xp = jnp.pad(x, ((0, 0), (pad, pad), (pad, pad), (0, 0)))
    Ho = H + 2 * pad - dil * (kh - 1)
    Wo = W + 2 * pad - dil * (kw - 1)
    cols = [xp[:, ki * dil:ki * dil + Ho, kj * dil:kj * dil + Wo, :]
            for ki in range(kh) for kj in range(kw)]
    return jnp.concatenate(cols, axis=-1)


def im2col_taps(x, kh, kw, dil, pad):
    """x: [N,H,W,C] -> [kh*kw, N, Ho, Wo, C]  (tap-major; feeds the tap grid axis)."""
    N, H, W, C = x.shape
    xp = jnp.pad(x, ((0, 0), (pad, pad), (pad, pad), (0, 0)))
    Ho = H + 2 * pad - dil * (kh - 1)
    Wo = W + 2 * pad - dil * (kw - 1)
    taps = [xp[:, ki * dil:ki * dil + Ho, kj * dil:kj * dil + Wo, :]
            for ki in range(kh) for kj in range(kw)]
    return jnp.stack(taps, axis=0)


def pixel_shuffle_nhwc(x, r):
    N, H, W, C = x.shape
    cout = C // (r * r)
    x = x.reshape(N, H, W, cout, r, r)
    x = jnp.transpose(x, (0, 1, 4, 2, 5, 3))
    return x.reshape(N, H * r, W * r, cout)


def avg_pool_3x3_s2(x):
    # nn.AvgPool2d(kernel_size=3, stride=2, padding=1), count_include_pad=True
    s = lax.reduce_window(x.astype(jnp.float32), 0.0, lax.add, (1, 3, 3, 1), (1, 2, 2, 1),
                          [(0, 0), (1, 1), (1, 1), (0, 0)])
    return (s / 9.0).astype(x.dtype)


# --------------------------------------------------------------------------
# Layer wrappers
# --------------------------------------------------------------------------
def conv2d(p, x, *, dil, pad, act, bn=None, out_dtype=jnp.bfloat16):
    N, H, W, C = x.shape
    kh, kw = p["kh"], p["kw"]
    x = x.astype(jnp.bfloat16)
    cout = p["w"].shape[1]
    scale, shift = _affine(bn, cout)

    if kh == 1 and kw == 1:
        out = pallas_matmul_fused((x.reshape(N * H * W, C),), (p["w"],), p["b"],
                                  scale, shift, act_mode=act, out_dtype=out_dtype)
        return out.reshape(N, H, W, cout)

    Ho = H + 2 * pad - dil * (kh - 1)
    Wo = W + 2 * pad - dil * (kw - 1)

    if Wo % 16 == 0:
        # implicit-im2col path (manual DMA; no patches tensor in HBM)
        Hp, Wp = H + 2 * pad, W + 2 * pad
        xp = jnp.pad(x, ((0, 0), (pad, pad), (pad, pad), (0, 0)))
        xflat = xp.reshape(N * Hp, Wp, C)
        th = _pick_conv_rows(Ho, Wo, C, cout, kh, kw, dil)
        w3 = p["w"].reshape(kh * kw, C, cout)
        out = pallas_conv_implicit(xflat, w3, p["b"], scale, shift,
                                   n_img=N, hp=Hp, ho=Ho, wo=Wo, c=C, cout=cout,
                                   kh=kh, kw=kw, dil=dil, th=th,
                                   act_mode=act, out_dtype=out_dtype)
        return out.reshape(N, Ho, Wo, cout)

    # fallback: explicit im2col (only tiny odd-width deep layers hit this)
    patches = im2col(x, kh, kw, dil, pad)
    flat = patches.reshape(N * Ho * Wo, kh * kw * C)
    out = pallas_matmul_fused((flat,), (p["w"],), p["b"], scale, shift,
                              act_mode=act, out_dtype=out_dtype)
    return out.reshape(N, Ho, Wo, cout)


def conv1x1_multi(p, xs_nhwc, *, act, bn=None, out_dtype=jnp.bfloat16):
    """Concat-fused 1x1 conv: sum_i (x_i @ w_i); no concat tensor is built."""
    N, H, W, _ = xs_nhwc[0].shape
    cout = p["w"].shape[1]
    flats = tuple(x.astype(jnp.bfloat16).reshape(N * H * W, x.shape[-1]) for x in xs_nhwc)
    w_chunks, off = [], 0
    for x in xs_nhwc:
        k = x.shape[-1]
        w_chunks.append(p["w"][off:off + k])
        off += k
    scale, shift = _affine(bn, cout)
    out = pallas_matmul_fused(flats, tuple(w_chunks), p["b"], scale, shift,
                              act_mode=act, out_dtype=out_dtype)
    return out.reshape(N, H, W, cout)


def res_context_block(p, x):
    shortcut = conv2d(p["conv1"], x, dil=1, pad=0, act=ACT_LEAKY)
    resA1 = conv2d(p["conv2"], shortcut, dil=1, pad=1, act=ACT_LEAKY, bn=p["bn1"])
    resA2 = conv2d(p["conv3"], resA1, dil=2, pad=2, act=ACT_LEAKY, bn=p["bn2"])
    return shortcut + resA2


def res_block(p, x, pooling=True):
    shortcut = conv2d(p["conv1"], x, dil=1, pad=0, act=ACT_LEAKY)
    resA1 = conv2d(p["conv2"], x, dil=1, pad=1, act=ACT_LEAKY, bn=p["bn1"])
    resA2 = conv2d(p["conv3"], resA1, dil=2, pad=2, act=ACT_LEAKY, bn=p["bn2"])
    resA3 = conv2d(p["conv4"], resA2, dil=2, pad=1, act=ACT_LEAKY, bn=p["bn3"])
    resA = conv1x1_multi(p["conv5"], (resA1, resA2, resA3), act=ACT_LEAKY, bn=p["bn4"])
    resA = shortcut + resA
    if pooling:
        # Dropout2d: eval-mode identity
        return avg_pool_3x3_s2(resA), resA
    return resA


def up_block(p, x, skip, skip_ri):
    # TODO(synk): original MotionRV UpBlock source unavailable; residual-image skip
    # is fused by addition (only combination consistent with its conv1 channel count).
    upA = pixel_shuffle_nhwc(x, 2)
    upB = jnp.concatenate([upA, (skip + skip_ri).astype(jnp.bfloat16)], axis=-1)
    upE1 = conv2d(p["conv1"], upB, dil=1, pad=1, act=ACT_LEAKY, bn=p["bn1"])
    upE2 = conv2d(p["conv2"], upE1, dil=2, pad=2, act=ACT_LEAKY, bn=p["bn2"])
    upE3 = conv2d(p["conv3"], upE2, dil=2, pad=1, act=ACT_LEAKY, bn=p["bn3"])
    return conv1x1_multi(p["conv4"], (upE1, upE2, upE3), act=ACT_LEAKY, bn=p["bn4"])


def mga_attention(p, img_nhwc, flow_nhwc):
    N, H, W, C = img_nhwc.shape
    HW = H * W
    img = img_nhwc.reshape(N, HW, C).astype(jnp.bfloat16)
    flow = flow_nhwc.reshape(N, HW, C).astype(jnp.bfloat16)
    gate, sums = pallas_mga_gate_sum(img, flow, p["w_sp"], p["b_sp"])   # [N,HW,1], [N,1,C]
    feat = sums[:, 0, :] / float(HW)                                    # global avg pool
    fv = feat @ p["w_cw"] + p["b_cw"]                                   # tiny CxC 1x1 conv
    fv = jax.nn.softmax(fv, axis=-1) * float(C)
    out = pallas_mga_apply(img, gate, fv[:, None, :].astype(jnp.float32))
    return out.reshape(N, H, W, C)


def meta_kernel(p, data_nhwc, coord_nhwc):
    # TODO(synk): MetaKernel source not provided; reconstructed per the Meta-Kernel idea
    # (per-pixel 3x3 relative-coordinate MLP weights modulate the unfolded data, then a
    # 1x1 aggregation over the 9 neighbours), fused into one Pallas kernel.
    # TODO(synk): the 9-tap materialisation below could also be made implicit (DMA taps).
    N, H, W, Cd = data_nhwc.shape
    Cc = coord_nhwc.shape[-1]
    M = N * H * W
    coord_taps = im2col_taps(coord_nhwc, 3, 3, 1, 1)                    # [9,N,H,W,Cc]
    rel3 = (coord_taps - coord_nhwc[None]).reshape(9, M, Cc).astype(jnp.bfloat16)
    data3 = im2col_taps(data_nhwc.astype(jnp.bfloat16), 3, 3, 1, 1).reshape(9, M, Cd)
    out = pallas_meta_fused(rel3, data3, p["wmlp"], p["bmlp"], p["wagg"], p["bagg"])
    return out.reshape(N, H, W, Cd)


# --------------------------------------------------------------------------
# Parameter init (deterministic, synthetic)
# --------------------------------------------------------------------------
class KeyGen:
    def __init__(self, seed):
        self.key = jax.random.PRNGKey(seed)

    def __call__(self):
        self.key, sub = jax.random.split(self.key)
        return sub


def init_conv(kg, cin, cout, kh=1, kw=1):
    fan_in = kh * kw * cin
    w = jax.random.normal(kg(), (fan_in, cout), jnp.float32) / jnp.sqrt(float(fan_in))
    b = 0.01 * jax.random.normal(kg(), (1, cout), jnp.float32)
    # weights stored pre-converted to bf16; layout is tap-major, channel-minor
    return {"w": w.astype(jnp.bfloat16), "b": b, "kh": kh, "kw": kw}


def init_bn(kg, c):
    gamma = 1.0 + 0.1 * jax.random.normal(kg(), (1, c), jnp.float32)
    beta = 0.1 * jax.random.normal(kg(), (1, c), jnp.float32)
    mean = 0.1 * jax.random.normal(kg(), (1, c), jnp.float32)
    var = 1.0 + 0.1 * jnp.abs(jax.random.normal(kg(), (1, c), jnp.float32))
    scale = gamma / jnp.sqrt(var + BN_EPS)
    shift = beta - mean * scale
    return {"scale": scale, "shift": shift}


def init_res_context(kg, cin, cout):
    return {"conv1": init_conv(kg, cin, cout, 1, 1),
            "conv2": init_conv(kg, cout, cout, 3, 3), "bn1": init_bn(kg, cout),
            "conv3": init_conv(kg, cout, cout, 3, 3), "bn2": init_bn(kg, cout)}


def init_res_block(kg, cin, cout):
    return {"conv1": init_conv(kg, cin, cout, 1, 1),
            "conv2": init_conv(kg, cin, cout, 3, 3), "bn1": init_bn(kg, cout),
            "conv3": init_conv(kg, cout, cout, 3, 3), "bn2": init_bn(kg, cout),
            "conv4": init_conv(kg, cout, cout, 2, 2), "bn3": init_bn(kg, cout),
            "conv5": init_conv(kg, 3 * cout, cout, 1, 1), "bn4": init_bn(kg, cout)}


def init_up_block(kg, cin, cout):
    return {"conv1": init_conv(kg, cin // 4 + 2 * cout, cout, 3, 3), "bn1": init_bn(kg, cout),
            "conv2": init_conv(kg, cout, cout, 3, 3), "bn2": init_bn(kg, cout),
            "conv3": init_conv(kg, cout, cout, 2, 2), "bn3": init_bn(kg, cout),
            "conv4": init_conv(kg, 3 * cout, cout, 1, 1), "bn4": init_bn(kg, cout)}


def init_mga(kg, c):
    return {"w_sp": 0.1 * jax.random.normal(kg(), (1, c), jnp.float32),
            "b_sp": 0.1 * jax.random.normal(kg(), (1, 1), jnp.float32),
            "w_cw": 0.1 * jax.random.normal(kg(), (c, c), jnp.float32),
            "b_cw": 0.1 * jax.random.normal(kg(), (1, c), jnp.float32)}


def init_params(seed, nclasses, n_input_scans, range_channel=5):
    kg = KeyGen(seed)
    p = {}
    p["RI_downCntx"] = init_res_context(kg, n_input_scans, 32)
    p["RI_resBlock1"] = init_res_block(kg, 32, 64)
    p["RI_resBlock2"] = init_res_block(kg, 64, 128)
    p["RI_resBlock3"] = init_res_block(kg, 128, 256)
    p["RI_resBlock4"] = init_res_block(kg, 256, 256)
    p["downCntx"] = init_res_context(kg, range_channel, 32)
    p["downCntx2"] = init_res_context(kg, 32, 32)
    p["downCntx3"] = init_res_context(kg, 32, 32)
    p["metaConv"] = {
        "wmlp": (jax.random.normal(kg(), (range_channel, 32), jnp.float32)
                 / jnp.sqrt(float(range_channel))).astype(jnp.bfloat16),
        "bmlp": 0.01 * jax.random.normal(kg(), (1, 32), jnp.float32),
        "wagg": (jax.random.normal(kg(), (9, 32, 32), jnp.float32)
                 / jnp.sqrt(288.0)).astype(jnp.bfloat16),
        "bagg": 0.01 * jax.random.normal(kg(), (1, 32), jnp.float32),
    }
    p["resBlock1"] = init_res_block(kg, 32, 64)
    p["resBlock2"] = init_res_block(kg, 64, 128)
    p["resBlock3"] = init_res_block(kg, 128, 256)
    p["resBlock4"] = init_res_block(kg, 256, 256)
    p["resBlock5"] = init_res_block(kg, 256, 256)
    p["upBlock1"] = init_up_block(kg, 256, 128)
    p["upBlock2"] = init_up_block(kg, 128, 128)
    p["upBlock3"] = init_up_block(kg, 128, 64)
    p["upBlock4"] = init_up_block(kg, 64, 32)
    p["mga_conv1"] = init_mga(kg, 32)
    p["mga_layer0"] = init_mga(kg, 64)
    p["mga_layer1"] = init_mga(kg, 128)
    p["mga_layer2"] = init_mga(kg, 256)
    p["mga_layer3"] = init_mga(kg, 256)
    p["feature_aggregation"] = init_conv(kg, 32, nclasses, 1, 1)
    return p


# --------------------------------------------------------------------------
# Full forward pass
# --------------------------------------------------------------------------
def salsanext_forward(params, x_nchw, range_channel=5):
    x = jnp.transpose(x_nchw, (0, 2, 3, 1)).astype(jnp.float32)   # NCHW -> NHWC
    current_range = x[..., :range_channel]
    residual = x[..., range_channel:]

    # residual-image (motion) branch
    RI_downCntx = res_context_block(params["RI_downCntx"], residual)
    RI_down0c, RI_down0b = res_block(params["RI_resBlock1"], RI_downCntx)
    RI_down1c, RI_down1b = res_block(params["RI_resBlock2"], RI_down0c)
    RI_down2c, RI_down2b = res_block(params["RI_resBlock3"], RI_down1c)
    RI_down3c, RI_down3b = res_block(params["RI_resBlock4"], RI_down2c)

    # range-image branch
    downCntx = res_context_block(params["downCntx"], current_range)
    downCntx = meta_kernel(params["metaConv"], downCntx, current_range)
    downCntx = res_context_block(params["downCntx2"], downCntx)
    downCntx = res_context_block(params["downCntx3"], downCntx)

    # encoder with MGA cross-attention
    downCntx = mga_attention(params["mga_conv1"], downCntx, RI_downCntx)
    down0c, down0b = res_block(params["resBlock1"], downCntx)
    down0c = mga_attention(params["mga_layer0"], down0c, RI_down0c)
    down1c, down1b = res_block(params["resBlock2"], down0c)
    down1c = mga_attention(params["mga_layer1"], down1c, RI_down1c)
    down2c, down2b = res_block(params["resBlock3"], down1c)
    down2c = mga_attention(params["mga_layer2"], down2c, RI_down2c)
    down3c, down3b = res_block(params["resBlock4"], down2c)
    down3c = mga_attention(params["mga_layer3"], down3c, RI_down3c)
    down5c = res_block(params["resBlock5"], down3c, pooling=False)

    # decoder
    up4e = up_block(params["upBlock1"], down5c, down3b, RI_down3b)
    up3e = up_block(params["upBlock2"], up4e, down2b, RI_down2b)
    up2e = up_block(params["upBlock3"], up3e, down1b, RI_down1b)
    up1e = up_block(params["upBlock4"], up2e, down0b, RI_down0b)

    logits = conv2d(params["feature_aggregation"], up1e, dil=1, pad=0,
                    act=ACT_NONE, out_dtype=jnp.float32)
    probs = jax.nn.softmax(logits, axis=-1)                        # channel softmax (f32)
    return jnp.transpose(probs, (0, 3, 1, 2))                      # back to NCHW


if __name__ == "__main__":
    nclasses = 3
    n_input_scans = 3
    range_channel = 5
    B, H, W = 2, 16, 16
    C_in = range_channel + n_input_scans

    x = jax.random.normal(jax.random.PRNGKey(0), (B, C_in, H, W), jnp.float32)
    params = init_params(seed=1, nclasses=nclasses, n_input_scans=n_input_scans,
                         range_channel=range_channel)

    out = salsanext_forward(params, x, range_channel=range_channel)
    out = jax.block_until_ready(out)

    assert out.shape == (B, nclasses, H, W), out.shape
    assert bool(jnp.all(jnp.isfinite(out)))
    # channel softmax -> each pixel's class probabilities sum to 1
    assert bool(jnp.allclose(jnp.sum(out, axis=1), 1.0, atol=1e-4))
    print("KERNEL_OK")
</pallas_src>

<mosaic_0001>
module attributes {stable_mosaic.version = 11 : i64} {
  func.func @_matmul_fused_kernel(%arg0: i32, %arg1: i32, %arg2: memref<512x3xbf16, #tpu.memory_space<vmem>>, %arg3: memref<3x32xbf16, #tpu.memory_space<vmem>>, %arg4: memref<1x32xf32, #tpu.memory_space<vmem>>, %arg5: memref<1x32xf32, #tpu.memory_space<vmem>>, %arg6: memref<1x32xf32, #tpu.memory_space<vmem>>, %arg7: memref<512x32xbf16, #tpu.memory_space<vmem>>) attributes {dimension_semantics = [#tpu.dimension_semantics<parallel>, #tpu.dimension_semantics<parallel>], iteration_bounds = array<i64: 1, 1>, scalar_prefetch = 0 : i64, scratch_operands = 0 : i64, tpu.core_type = #tpu.core_type<tc>, window_params = [{transform_indices = @transform_0, window_bounds = array<i64: 512, 3>}, {transform_indices = @transform_1, window_bounds = array<i64: 3, 32>}, {transform_indices = @transform_2, window_bounds = array<i64: 1, 32>}, {transform_indices = @transform_3, window_bounds = array<i64: 1, 32>}, {transform_indices = @transform_4, window_bounds = array<i64: 1, 32>}, {transform_indices = @transform_5, window_bounds = array<i64: 512, 32>}]} {
    %c0 = arith.constant 0 : index
    %c0_0 = arith.constant 0 : index
    %0 = vector.load %arg2[%c0, %c0_0] : memref<512x3xbf16, #tpu.memory_space<vmem>>, vector<512x3xbf16>
    %c0_1 = arith.constant 0 : index
    %c0_2 = arith.constant 0 : index
    %1 = vector.load %arg3[%c0_1, %c0_2] : memref<3x32xbf16, #tpu.memory_space<vmem>>, vector<3x32xbf16>
    %cst = arith.constant dense<0.000000e+00> : vector<512x32xf32>
    %2 = tpu.matmul %0, %1, %cst {dimension_numbers = #tpu.dot_dimension_numbers<[1], [0], [0], [1], [0, 0, 1, 1], [], []>} : vector<512x3xbf16>, vector<3x32xbf16>, vector<512x32xf32> -> vector<512x32xf32>
    %c0_3 = arith.constant 0 : index
    %c0_4 = arith.constant 0 : index
    %3 = vector.load %arg4[%c0_3, %c0_4] : memref<1x32xf32, #tpu.memory_space<vmem>>, vector<1x32xf32>
    %4 = vector.broadcast %3 : vector<1x32xf32> to vector<512x32xf32>
    %5 = arith.addf %2, %4 : vector<512x32xf32>
    %cst_5 = arith.constant 0.000000e+00 : f32
    %6 = vector.broadcast %cst_5 : f32 to vector<512x32xf32>
    %7 = arith.cmpf ogt, %5, %6 : vector<512x32xf32>
    %cst_6 = arith.constant 0.00999999977 : f32
    %8 = vector.broadcast %cst_6 : f32 to vector<512x32xf32>
    %9 = arith.mulf %8, %5 : vector<512x32xf32>
    %10 = arith.select %7, %5, %9 : vector<512x32xi1>, vector<512x32xf32>
    %c0_7 = arith.constant 0 : index
    %c0_8 = arith.constant 0 : index
    %11 = vector.load %arg5[%c0_7, %c0_8] : memref<1x32xf32, #tpu.memory_space<vmem>>, vector<1x32xf32>
    %12 = vector.broadcast %11 : vector<1x32xf32> to vector<512x32xf32>
    %13 = arith.mulf %10, %12 : vector<512x32xf32>
    %c0_9 = arith.constant 0 : index
    %c0_10 = arith.constant 0 : index
    %14 = vector.load %arg6[%c0_9, %c0_10] : memref<1x32xf32, #tpu.memory_space<vmem>>, vector<1x32xf32>
    %15 = vector.broadcast %14 : vector<1x32xf32> to vector<512x32xf32>
    %16 = arith.addf %13, %15 : vector<512x32xf32>
    %17 = arith.truncf %16 : vector<512x32xf32> to vector<512x32xbf16>
    %c0_11 = arith.constant 0 : index
    %c0_12 = arith.constant 0 : index
    %18 = vector.load %arg7[%c0_11, %c0_12] : memref<512x32xbf16, #tpu.memory_space<vmem>>, vector<512x32xbf16>
    tpu.vector_store %arg7[%c0_11, %c0_12], %17 {strides = array<i32>} : memref<512x32xbf16, #tpu.memory_space<vmem>>, vector<512x32xbf16>,
    return
  }
  func.func @transform_0(%arg0: i32, %arg1: i32) -> (i32, i32) {
    %c0_i32 = arith.constant 0 : i32
    %c0_i32_0 = arith.constant 0 : i32
    return %arg0, %c0_i32 : i32, i32
  }
  func.func @transform_1(%arg0: i32, %arg1: i32) -> (i32, i32) {
    %c0_i32 = arith.constant 0 : i32
    %c0_i32_0 = arith.constant 0 : i32
    return %c0_i32, %arg1 : i32, i32
  }
  func.func @transform_2(%arg0: i32, %arg1: i32) -> (i32, i32) {
    %c0_i32 = arith.constant 0 : i32
    %c0_i32_0 = arith.constant 0 : i32
    return %c0_i32, %arg1 : i32, i32
  }
  func.func @transform_3(%arg0: i32, %arg1: i32) -> (i32, i32) {
    %c0_i32 = arith.constant 0 : i32
    %c0_i32_0 = arith.constant 0 : i32
    return %c0_i32, %arg1 : i32, i32
  }
  func.func @transform_4(%arg0: i32, %arg1: i32) -> (i32, i32) {
    %c0_i32 = arith.constant 0 : i32
    %c0_i32_0 = arith.constant 0 : i32
    return %c0_i32, %arg1 : i32, i32
  }
  func.func @transform_5(%arg0: i32, %arg1: i32) -> (i32, i32) {
    %c0_i32 = arith.constant 0 : i32
    return %arg0, %arg1 : i32, i32
  }
}

</mosaic_0001>

<llo_original>
// kernel: pallas_matmul_fused.1
$region0: #{pallas_matmul_fused.1}
  #allocation0 [shape = 'u32[]', space=smem, size = 0x4, offset = 0x4, fixed_abs, tag = 'smem constant byte address 0x4 - core index']
  #allocation1 [shape = 'u32[144,128]{1,0:T(1,128)}', space=vmem, size = 0x12000, scoped, tag = 'internal scratch']
  %s0 = inlined_call_operand.vmem [shape: bf16[512,3], index: 0, kind: input, shape index: {}]
  %s1 = inlined_call_operand.vmem [shape: bf16[3,32], index: 1, kind: input, shape index: {}]
  %s2 = inlined_call_operand.vmem [shape: f32[1,32], index: 2, kind: input, shape index: {}]
  %s3 = inlined_call_operand.vmem [shape: f32[1,32], index: 3, kind: input, shape index: {}]
  %s4 = inlined_call_operand.vmem [shape: f32[1,32], index: 4, kind: input, shape index: {}]
  %s5 = inlined_call_operand.vmem [shape: bf16[512,32], index: 5, kind: output, shape index: {}]
  %s6 = sld [smem:[#allocation0]]
  $region30: #{pallas_matmul_fused.1} parent=0
    _
  %s8 = ssub.s32 1, %s6
  %s9 = scalar_select 0, %s8, %s6
  // Predicated region
  $region2: #{pallas_matmul_fused.1} parent=0 // pred_check
    _
  $region3: #{pallas_matmul_fused.1} parent=0 // pred_check_branch
    %11 = sbr.rel (0) target = $region5
  $region4: #{pallas_matmul_fused.1} parent=0 // pred_region
    _
  $region5: #{pallas_matmul_fused.1} parent=0 // pred_fallthru
    _
  // Predicated region
  $region6: #{pallas_matmul_fused.1} parent=0 // pred_check
    _
  $region7: #{pallas_matmul_fused.1} parent=0 // pred_check_branch
    %13 = sbr.rel (0) target = $region9
  $region8: #{pallas_matmul_fused.1} parent=0 // pred_region
    _
  $region9: #{pallas_matmul_fused.1} parent=0 // pred_fallthru
    _
  // Predicated region
  $region10: #{pallas_matmul_fused.1} parent=0 // pred_check
    _
  $region11: #{pallas_matmul_fused.1} parent=0 // pred_check_branch
    %15 = sbr.rel (0) target = $region13
  $region12: #{pallas_matmul_fused.1} parent=0 // pred_region
    _
  $region13: #{pallas_matmul_fused.1} parent=0 // pred_fallthru
    _
  // Predicated region
  $region14: #{pallas_matmul_fused.1} parent=0 // pred_check
    _
  $region15: #{pallas_matmul_fused.1} parent=0 // pred_check_branch
    %17 = sbr.rel (0) target = $region17
  $region16: #{pallas_matmul_fused.1} parent=0 // pred_region
    _
  $region17: #{pallas_matmul_fused.1} parent=0 // pred_fallthru
    _
  // Predicated region
  $region18: #{pallas_matmul_fused.1} parent=0 // pred_check
    _
  $region19: #{pallas_matmul_fused.1} parent=0 // pred_check_branch
    %19 = sbr.rel (0) target = $region21
  $region20: #{pallas_matmul_fused.1} parent=0 // pred_region
    _
  $region21: #{pallas_matmul_fused.1} parent=0 // pred_fallthru
    _
  %v21 = vld [vmem:[%s0] sm:$0xf]
  %v22 = vld [vmem:[%s0 + $0x4] sm:$0xf]
  %v23 = vld [vmem:[%s0 + $0x8] sm:$0xf]
  %v24 = vld [vmem:[%s0 + $0xc] sm:$0xf]
  %v25 = vld [vmem:[%s0 + $0x10] sm:$0xf]
  %v26 = vld [vmem:[%s0 + $0x14] sm:$0xf]
  %v27 = vld [vmem:[%s0 + $0x18] sm:$0xf]
  %v28 = vld [vmem:[%s0 + $0x1c] sm:$0xf]
  %v29 = vld [vmem:[%s0 + $0x20] sm:$0xf]
  %v30 = vld [vmem:[%s0 + $0x24] sm:$0xf]
  %v31 = vld [vmem:[%s0 + $0x28] sm:$0xf]
  %v32 = vld [vmem:[%s0 + $0x2c] sm:$0xf]
  %v33 = vld [vmem:[%s0 + $0x30] sm:$0xf]
  %v34 = vld [vmem:[%s0 + $0x34] sm:$0xf]
  %v35 = vld [vmem:[%s0 + $0x38] sm:$0xf]
  %v36 = vld [vmem:[%s0 + $0x3c] sm:$0xf]
  %v37 = vld [vmem:[%s0 + $0x40] sm:$0xf]
  %v38 = vld [vmem:[%s0 + $0x44] sm:$0xf]
  %v39 = vld [vmem:[%s0 + $0x48] sm:$0xf]
  %v40 = vld [vmem:[%s0 + $0x4c] sm:$0xf]
  %v41 = vld [vmem:[%s0 + $0x50] sm:$0xf]
  %v42 = vld [vmem:[%s0 + $0x54] sm:$0xf]
  %v43 = vld [vmem:[%s0 + $0x58] sm:$0xf]
  %v44 = vld [vmem:[%s0 + $0x5c] sm:$0xf]
  %v45 = vld [vmem:[%s0 + $0x60] sm:$0xf]
  %v46 = vld [vmem:[%s0 + $0x64] sm:$0xf]
  %v47 = vld [vmem:[%s0 + $0x68] sm:$0xf]
  %v48 = vld [vmem:[%s0 + $0x6c] sm:$0xf]
  %v49 = vld [vmem:[%s0 + $0x70] sm:$0xf]
  %v50 = vld [vmem:[%s0 + $0x74] sm:$0xf]
  %v51 = vld [vmem:[%s0 + $0x78] sm:$0xf]
  %v52 = vld [vmem:[%s0 + $0x7c] sm:$0xf]
  %v53 = vld [vmem:[%s0 + $0x80] sm:$0xf]
  %v54 = vld [vmem:[%s0 + $0x84] sm:$0xf]
  %v55 = vld [vmem:[%s0 + $0x88] sm:$0xf]
  %v56 = vld [vmem:[%s0 + $0x8c] sm:$0xf]
  %v57 = vld [vmem:[%s0 + $0x90] sm:$0xf]
  %v58 = vld [vmem:[%s0 + $0x94] sm:$0xf]
  %v59 = vld [vmem:[%s0 + $0x98] sm:$0xf]
  %v60 = vld [vmem:[%s0 + $0x9c] sm:$0xf]
  %v61 = vld [vmem:[%s0 + $0xa0] sm:$0xf]
  %v62 = vld [vmem:[%s0 + $0xa4] sm:$0xf]
  %v63 = vld [vmem:[%s0 + $0xa8] sm:$0xf]
  %v64 = vld [vmem:[%s0 + $0xac] sm:$0xf]
  %v65 = vld [vmem:[%s0 + $0xb0] sm:$0xf]
  %v66 = vld [vmem:[%s0 + $0xb4] sm:$0xf]
  %v67 = vld [vmem:[%s0 + $0xb8] sm:$0xf]
  %v68 = vld [vmem:[%s0 + $0xbc] sm:$0xf]
  %v69 = vld [vmem:[%s0 + $0xc0] sm:$0xf]
  %v70 = vld [vmem:[%s0 + $0xc4] sm:$0xf]
  %v71 = vld [vmem:[%s0 + $0xc8] sm:$0xf]
  %v72 = vld [vmem:[%s0 + $0xcc] sm:$0xf]
  %v73 = vld [vmem:[%s0 + $0xd0] sm:$0xf]
  %v74 = vld [vmem:[%s0 + $0xd4] sm:$0xf]
  %v75 = vld [vmem:[%s0 + $0xd8] sm:$0xf]
  %v76 = vld [vmem:[%s0 + $0xdc] sm:$0xf]
  %v77 = vld [vmem:[%s0 + $0xe0] sm:$0xf]
  %v78 = vld [vmem:[%s0 + $0xe4] sm:$0xf]
  %v79 = vld [vmem:[%s0 + $0xe8] sm:$0xf]
  %v80 = vld [vmem:[%s0 + $0xec] sm:$0xf]
  %v81 = vld [vmem:[%s0 + $0xf0] sm:$0xf]
  %v82 = vld [vmem:[%s0 + $0xf4] sm:$0xf]
  %v83 = vld [vmem:[%s0 + $0xf8] sm:$0xf]
  %v84 = vld [vmem:[%s0 + $0xfc] sm:$0xf]
  %v85 = vld [vmem:[%s1] sm:$0x3]
  %v86 = vld [vmem:[%s2] sm:$0x1]
  %v88 = vlaneseq
  %v89 = vshrl.u32 %v88, 7
  %v90 = vsub.s32 0, %v89
  %v91 = vrot.slane %v86, %v90
  %v157 = vunpack.c.l.b16 %v21
  %v158 = vunpack.c.l.b16 %v22
  %v159 = vunpack.c.l.b16 %v23
  %v160 = vunpack.c.l.b16 %v24
  %v161 = vunpack.c.l.b16 %v25
  %v162 = vunpack.c.l.b16 %v26
  %v163 = vunpack.c.l.b16 %v27
  %v164 = vunpack.c.l.b16 %v28
  %v165 = vunpack.c.l.b16 %v29
  %v166 = vunpack.c.l.b16 %v30
  %v167 = vunpack.c.l.b16 %v31
  %v168 = vunpack.c.l.b16 %v32
  %v169 = vunpack.c.l.b16 %v33
  %v170 = vunpack.c.l.b16 %v34
  %v171 = vunpack.c.l.b16 %v35
  %v172 = vunpack.c.l.b16 %v36
  %v173 = vunpack.c.l.b16 %v37
  %v174 = vunpack.c.l.b16 %v38
  %v175 = vunpack.c.l.b16 %v39
  %v176 = vunpack.c.l.b16 %v40
  %v177 = vunpack.c.l.b16 %v41
  %v178 = vunpack.c.l.b16 %v42
  %v179 = vunpack.c.l.b16 %v43
  %v180 = vunpack.c.l.b16 %v44
  %v181 = vunpack.c.l.b16 %v45
  %v182 = vunpack.c.l.b16 %v46
  %v183 = vunpack.c.l.b16 %v47
  %v184 = vunpack.c.l.b16 %v48
  %v185 = vunpack.c.l.b16 %v49
  %v186 = vunpack.c.l.b16 %v50
  %v187 = vunpack.c.l.b16 %v51
  %v188 = vunpack.c.l.b16 %v52
  %v189 = vunpack.c.l.b16 %v53
  %v190 = vunpack.c.l.b16 %v54
  %v191 = vunpack.c.l.b16 %v55
  %v192 = vunpack.c.l.b16 %v56
  %v193 = vunpack.c.l.b16 %v57
  %v194 = vunpack.c.l.b16 %v58
  %v195 = vunpack.c.l.b16 %v59
  %v196 = vunpack.c.l.b16 %v60
  %v197 = vunpack.c.l.b16 %v61
  %v198 = vunpack.c.l.b16 %v62
  %v199 = vunpack.c.l.b16 %v63
  %v200 = vunpack.c.l.b16 %v64
  %v201 = vunpack.c.l.b16 %v65
  %v202 = vunpack.c.l.b16 %v66
  %v203 = vunpack.c.l.b16 %v67
  %v204 = vunpack.c.l.b16 %v68
  %v205 = vunpack.c.l.b16 %v69
  %v206 = vunpack.c.l.b16 %v70
  %v207 = vunpack.c.l.b16 %v71
  %v208 = vunpack.c.l.b16 %v72
  %v209 = vunpack.c.l.b16 %v73
  %v210 = vunpack.c.l.b16 %v74
  %v211 = vunpack.c.l.b16 %v75
  %v212 = vunpack.c.l.b16 %v76
  %v213 = vunpack.c.l.b16 %v77
  %v214 = vunpack.c.l.b16 %v78
  %v215 = vunpack.c.l.b16 %v79
  %v216 = vunpack.c.l.b16 %v80
  %v217 = vunpack.c.l.b16 %v81
  %v218 = vunpack.c.l.b16 %v82
  %v219 = vunpack.c.l.b16 %v83
  %v220 = vunpack.c.l.b16 %v84
  %v221 = vpack.c.b16 %v158, %v157
  %v222 = vpack.c.b16 %v160, %v159
  %v223 = vpack.c.b16 %v162, %v161
  %v224 = vpack.c.b16 %v164, %v163
  %v225 = vpack.c.b16 %v166, %v165
  %v226 = vpack.c.b16 %v168, %v167
  %v227 = vpack.c.b16 %v170, %v169
  %v228 = vpack.c.b16 %v172, %v171
  %v229 = vpack.c.b16 %v174, %v173
  %v230 = vpack.c.b16 %v176, %v175
  %v231 = vpack.c.b16 %v178, %v177
  %v232 = vpack.c.b16 %v180, %v179
  %v233 = vpack.c.b16 %v182, %v181
  %v234 = vpack.c.b16 %v184, %v183
  %v235 = vpack.c.b16 %v186, %v185
  %v236 = vpack.c.b16 %v188, %v187
  %v237 = vpack.c.b16 %v190, %v189
  %v238 = vpack.c.b16 %v192, %v191
  %v239 = vpack.c.b16 %v194, %v193
  %v240 = vpack.c.b16 %v196, %v195
  %v241 = vpack.c.b16 %v198, %v197
  %v242 = vpack.c.b16 %v200, %v199
  %v243 = vpack.c.b16 %v202, %v201
  %v244 = vpack.c.b16 %v204, %v203
  %v245 = vpack.c.b16 %v206, %v205
  %v246 = vpack.c.b16 %v208, %v207
  %v247 = vpack.c.b16 %v210, %v209
  %v248 = vpack.c.b16 %v212, %v211
  %v249 = vpack.c.b16 %v214, %v213
  %v250 = vpack.c.b16 %v216, %v215
  %v251 = vpack.c.b16 %v218, %v217
  %v252 = vpack.c.b16 %v220, %v219
  %vm253 = vcmask 23552
  %v255 = vsel %vm253, %v221, 0
  %v258 = vsel %vm253, %v222, 0
  %v261 = vsel %vm253, %v223, 0
  %v264 = vsel %vm253, %v224, 0
  %v267 = vsel %vm253, %v225, 0
  %v270 = vsel %vm253, %v226, 0
  %v273 = vsel %vm253, %v227, 0
  %v276 = vsel %vm253, %v228, 0
  %v279 = vsel %vm253, %v229, 0
  %v282 = vsel %vm253, %v230, 0
  %v285 = vsel %vm253, %v231, 0
  %v288 = vsel %vm253, %v232, 0
  %v291 = vsel %vm253, %v233, 0
  %v294 = vsel %vm253, %v234, 0
  %v297 = vsel %vm253, %v235, 0
  %v300 = vsel %vm253, %v236, 0
  %v303 = vsel %vm253, %v237, 0
  %v306 = vsel %vm253, %v238, 0
  %v309 = vsel %vm253, %v239, 0
  %v312 = vsel %vm253, %v240, 0
  %v315 = vsel %vm253, %v241, 0
  %v318 = vsel %vm253, %v242, 0
  %v321 = vsel %vm253, %v243, 0
  %v324 = vsel %vm253, %v244, 0
  %v327 = vsel %vm253, %v245, 0
  %v330 = vsel %vm253, %v246, 0
  %v333 = vsel %vm253, %v247, 0
  %v336 = vsel %vm253, %v248, 0
  %v339 = vsel %vm253, %v249, 0
  %v342 = vsel %vm253, %v250, 0
  %v345 = vsel %vm253, %v251, 0
  %v348 = vsel %vm253, %v252, 0
  %vm350 = vcmask 1040384
  %vm351 = vcmask 1041408
  %v352 = vsel %vm350, 4294967295, 65535
  %v353 = vsel %vm351, %v352, 0
  %v355 = vand.u32 %v85, %v353
  %357 = vmatprep.subr.bf16.mxu0 0
  %358 = vmatpush1.bf16.msra.mxu0 %v355
  %359 = vmatprep.subr.bf16.mxu0 0
  %360 = vmatpush1.bf16.msra.mxu0 0
  %361 = vmatprep.subr.bf16.mxu0 0
  %362 = vmatpush1.bf16.msra.mxu0 0
  %363 = vmatprep.subr.bf16.mxu0 0
  %364 = vmatpush1.bf16.msra.mxu0 0
  %365 = vmatprep.subr.bf16.mxu0 0
  %366 = vmatpush1.bf16.msra.mxu0 0
  %367 = vmatprep.subr.bf16.mxu0 0
  %368 = vmatpush1.bf16.msra.mxu0 0
  %369 = vmatprep.subr.bf16.mxu0 0
  %370 = vmatpush1.bf16.msra.mxu0 0
  %371 = vmatprep.subr.bf16.mxu0 0
  %372 = vmatpush1.bf16.msra.mxu0 0
  %373 = vmatprep.subr.bf16.mxu0 0
  %374 = vmatpush1.bf16.msra.mxu0 0
  %375 = vmatprep.subr.bf16.mxu0 0
  %376 = vmatpush1.bf16.msra.mxu0 0
  %377 = vmatprep.subr.bf16.mxu0 0
  %378 = vmatpush1.bf16.msra.mxu0 0
  %379 = vmatprep.subr.bf16.mxu0 0
  %380 = vmatpush1.bf16.msra.mxu0 0
  %381 = vmatprep.subr.bf16.mxu0 0
  %382 = vmatpush1.bf16.msra.mxu0 0
  %383 = vmatprep.subr.bf16.mxu0 0
  %384 = vmatpush1.bf16.msra.mxu0 0
  %385 = vmatprep.subr.bf16.mxu0 0
  %386 = vmatpush1.bf16.msra.mxu0 0
  %387 = vmatprep.subr.bf16.mxu0 0
  %388 = vmatpush1.bf16.msra.mxu0 0
  %389 = vmatprep.mubr.bf16.mxu0 0
  %390 = vmatmul.mubr.bf16.gmra.mrb[0].mxu0 %v255
  %v391 = vpop.f32.mrb[0].mxu0
  %v392 = vadd.f32 %v91, %v391
  %v393 = vpop.f32.mrb[0].mxu0
  %v394 = vpop.f32.mrb[0].mxu0
  %v395 = vadd.f32 %v91, %v394
  %v396 = vpop.f32.mrb[0].mxu0
  %397 = vmatprep.mubr.bf16.mxu0 0
  %398 = vmatmul.mubr.bf16.gmra.mrb[0].mxu0 %v258
  %v399 = vpop.f32.mrb[0].mxu0
  %v400 = vadd.f32 %v91, %v399
  %v401 = vpop.f32.mrb[0].mxu0
  %v402 = vpop.f32.mrb[0].mxu0
  %v403 = vadd.f32 %v91, %v402
  %v404 = vpop.f32.mrb[0].mxu0
  %405 = vmatprep.mubr.bf16.mxu0 0
  %406 = vmatmul.mubr.bf16.gmra.mrb[0].mxu0 %v261
  %v407 = vpop.f32.mrb[0].mxu0
  %v408 = vadd.f32 %v91, %v407
  %v409 = vpop.f32.mrb[0].mxu0
  %v410 = vpop.f32.mrb[0].mxu0
  %v411 = vadd.f32 %v91, %v410
  %v412 = vpop.f32.mrb[0].mxu0
  %413 = vmatprep.mubr.bf16.mxu0 0
  %414 = vmatmul.mubr.bf16.gmra.mrb[0].mxu0 %v264
  %v415 = vpop.f32.mrb[0].mxu0
  %v416 = vadd.f32 %v91, %v415
  %v417 = vpop.f32.mrb[0].mxu0
  %v418 = vpop.f32.mrb[0].mxu0
  %v419 = vadd.f32 %v91, %v418
  %v420 = vpop.f32.mrb[0].mxu0
  %421 = vmatprep.mubr.bf16.mxu0 0
  %422 = vmatmul.mubr.bf16.gmra.mrb[0].mxu0 %v267
  %v423 = vpop.f32.mrb[0].mxu0
  %v424 = vadd.f32 %v91, %v423
  %v425 = vpop.f32.mrb[0].mxu0
  %v426 = vpop.f32.mrb[0].mxu0
  %v427 = vadd.f32 %v91, %v426
  %v428 = vpop.f32.mrb[0].mxu0
  %429 = vmatprep.mubr.bf16.mxu0 0
  %430 = vmatmul.mubr.bf16.gmra.mrb[0].mxu0 %v270
  %v431 = vpop.f32.mrb[0].mxu0
  %v432 = vadd.f32 %v91, %v431
  %v433 = vpop.f32.mrb[0].mxu0
  %v434 = vpop.f32.mrb[0].mxu0
  %v435 = vadd.f32 %v91, %v434
  %v436 = vpop.f32.mrb[0].mxu0
  %437 = vmatprep.mubr.bf16.mxu0 0
  %438 = vmatmul.mubr.bf16.gmra.mrb[0].mxu0 %v273
  %v439 = vpop.f32.mrb[0].mxu0
  %v440 = vadd.f32 %v91, %v439
  %v441 = vpop.f32.mrb[0].mxu0
  %v442 = vpop.f32.mrb[0].mxu0
  %v443 = vadd.f32 %v91, %v442
  %v444 = vpop.f32.mrb[0].mxu0
  %445 = vmatprep.mubr.bf16.mxu0 0
  %446 = vmatmul.mubr.bf16.gmra.mrb[0].mxu0 %v276
  %v447 = vpop.f32.mrb[0].mxu0
  %v448 = vadd.f32 %v91, %v447
  %v449 = vpop.f32.mrb[0].mxu0
  %v450 = vpop.f32.mrb[0].mxu0
  %v451 = vadd.f32 %v91, %v450
  %v452 = vpop.f32.mrb[0].mxu0
  %453 = vmatprep.mubr.bf16.mxu0 0
  %454 = vmatmul.mubr.bf16.gmra.mrb[0].mxu0 %v279
  %v455 = vpop.f32.mrb[0].mxu0
  %v456 = vadd.f32 %v91, %v455
  %v457 = vpop.f32.mrb[0].mxu0
  %v458 = vpop.f32.mrb[0].mxu0
  %v459 = vadd.f32 %v91, %v458
  %v460 = vpop.f32.mrb[0].mxu0
  %461 = vmatprep.mubr.bf16.mxu0 0
  %462 = vmatmul.mubr.bf16.gmra.mrb[0].mxu0 %v282
  %v463 = vpop.f32.mrb[0].mxu0
  %v464 = vadd.f32 %v91, %v463
  %v465 = vpop.f32.mrb[0].mxu0
  %v466 = vpop.f32.mrb[0].mxu0
  %v467 = vadd.f32 %v91, %v466
  %v468 = vpop.f32.mrb[0].mxu0
  %469 = vmatprep.mubr.bf16.mxu0 0
  %470 = vmatmul.mubr.bf16.gmra.mrb[0].mxu0 %v285
  %v471 = vpop.f32.mrb[0].mxu0
  %v472 = vadd.f32 %v91, %v471
  %v473 = vpop.f32.mrb[0].mxu0
  %v474 = vpop.f32.mrb[0].mxu0
  %v475 = vadd.f32 %v91, %v474
  %v476 = vpop.f32.mrb[0].mxu0
  %477 = vmatprep.mubr.bf16.mxu0 0
  %478 = vmatmul.mubr.bf16.gmra.mrb[0].mxu0 %v288
  %v479 = vpop.f32.mrb[0].mxu0
  %v480 = vadd.f32 %v91, %v479
  %v481 = vpop.f32.mrb[0].mxu0
  %v482 = vpop.f32.mrb[0].mxu0
  %v483 = vadd.f32 %v91, %v482
  %v484 = vpop.f32.mrb[0].mxu0
  %485 = vmatprep.mubr.bf16.mxu0 0
  %486 = vmatmul.mubr.bf16.gmra.mrb[0].mxu0 %v291
  %v487 = vpop.f32.mrb[0].mxu0
  %v488 = vadd.f32 %v91, %v487
  %v489 = vpop.f32.mrb[0].mxu0
  %v490 = vpop.f32.mrb[0].mxu0
  %v491 = vadd.f32 %v91, %v490
  %v492 = vpop.f32.mrb[0].mxu0
  %493 = vmatprep.mubr.bf16.mxu0 0
  %494 = vmatmul.mubr.bf16.gmra.mrb[0].mxu0 %v294
  %v495 = vpop.f32.mrb[0].mxu0
  %v496 = vadd.f32 %v91, %v495
  %v497 = vpop.f32.mrb[0].mxu0
  %v498 = vpop.f32.mrb[0].mxu0
  %v499 = vadd.f32 %v91, %v498
  %v500 = vpop.f32.mrb[0].mxu0
  %501 = vmatprep.mubr.bf16.mxu0 0
  %502 = vmatmul.mubr.bf16.gmra.mrb[0].mxu0 %v297
  %v503 = vpop.f32.mrb[0].mxu0
  %v504 = vadd.f32 %v91, %v503
  %v505 = vpop.f32.mrb[0].mxu0
  %v506 = vpop.f32.mrb[0].mxu0
  %v507 = vadd.f32 %v91, %v506
  %v508 = vpop.f32.mrb[0].mxu0
  %509 = vmatprep.mubr.bf16.mxu0 0
  %510 = vmatmul.mubr.bf16.gmra.mrb[0].mxu0 %v300
  %v511 = vpop.f32.mrb[0].mxu0
  %v512 = vadd.f32 %v91, %v511
  %v513 = vpop.f32.mrb[0].mxu0
  %v514 = vpop.f32.mrb[0].mxu0
  %v515 = vadd.f32 %v91, %v514
  %v516 = vpop.f32.mrb[0].mxu0
  %517 = vmatprep.mubr.bf16.mxu0 0
  %518 = vmatmul.mubr.bf16.gmra.mrb[0].mxu0 %v303
  %v519 = vpop.f32.mrb[0].mxu0
  %v520 = vadd.f32 %v91, %v519
  %v521 = vpop.f32.mrb[0].mxu0
  %v522 = vpop.f32.mrb[0].mxu0
  %v523 = vadd.f32 %v91, %v522
  %v524 = vpop.f32.mrb[0].mxu0
  %525 = vmatprep.mubr.bf16.mxu0 0
  %526 = vmatmul.mubr.bf16.gmra.mrb[0].mxu0 %v306
  %v527 = vpop.f32.mrb[0].mxu0
  %v528 = vadd.f32 %v91, %v527
  %v529 = vpop.f32.mrb[0].mxu0
  %v530 = vpop.f32.mrb[0].mxu0
  %v531 = vadd.f32 %v91, %v530
  %v532 = vpop.f32.mrb[0].mxu0
  %533 = vmatprep.mubr.bf16.mxu0 0
  %534 = vmatmul.mubr.bf16.gmra.mrb[0].mxu0 %v309
  %v535 = vpop.f32.mrb[0].mxu0
  %v536 = vadd.f32 %v91, %v535
  %v537 = vpop.f32.mrb[0].mxu0
  %v538 = vpop.f32.mrb[0].mxu0
  %v539 = vadd.f32 %v91, %v538
  %v540 = vpop.f32.mrb[0].mxu0
  %541 = vmatprep.mubr.bf16.mxu0 0
  %542 = vmatmul.mubr.bf16.gmra.mrb[0].mxu0 %v312
  %v543 = vpop.f32.mrb[0].mxu0
  %v544 = vadd.f32 %v91, %v543
  %v545 = vpop.f32.mrb[0].mxu0
  %v546 = vpop.f32.mrb[0].mxu0
  %v547 = vadd.f32 %v91, %v546
  %v548 = vpop.f32.mrb[0].mxu0
  %549 = vmatprep.mubr.bf16.mxu0 0
  %550 = vmatmul.mubr.bf16.gmra.mrb[0].mxu0 %v315
  %v551 = vpop.f32.mrb[0].mxu0
  %v552 = vadd.f32 %v91, %v551
  %v553 = vpop.f32.mrb[0].mxu0
  %v554 = vpop.f32.mrb[0].mxu0
  %v555 = vadd.f32 %v91, %v554
  %v556 = vpop.f32.mrb[0].mxu0
  %557 = vmatprep.mubr.bf16.mxu0 0
  %558 = vmatmul.mubr.bf16.gmra.mrb[0].mxu0 %v318
  %v559 = vpop.f32.mrb[0].mxu0
  %v560 = vadd.f32 %v91, %v559
  %v561 = vpop.f32.mrb[0].mxu0
  %v562 = vpop.f32.mrb[0].mxu0
  %v563 = vadd.f32 %v91, %v562
  %v564 = vpop.f32.mrb[0].mxu0
  %565 = vmatprep.mubr.bf16.mxu0 0
  %566 = vmatmul.mubr.bf16.gmra.mrb[0].mxu0 %v321
  %v567 = vpop.f32.mrb[0].mxu0
  %v568 = vadd.f32 %v91, %v567
  %v569 = vpop.f32.mrb[0].mxu0
  %v570 = vpop.f32.mrb[0].mxu0
  %v571 = vadd.f32 %v91, %v570
  %v572 = vpop.f32.mrb[0].mxu0
  %573 = vmatprep.mubr.bf16.mxu0 0
  %574 = vmatmul.mubr.bf16.gmra.mrb[0].mxu0 %v324
  %v575 = vpop.f32.mrb[0].mxu0
  %v576 = vadd.f32 %v91, %v575
  %v577 = vpop.f32.mrb[0].mxu0
  %v578 = vpop.f32.mrb[0].mxu0
  %v579 = vadd.f32 %v91, %v578
  %v580 = vpop.f32.mrb[0].mxu0
  %581 = vmatprep.mubr.bf16.mxu0 0
  %582 = vmatmul.mubr.bf16.gmra.mrb[0].mxu0 %v327
  %v583 = vpop.f32.mrb[0].mxu0
  %v584 = vadd.f32 %v91, %v583
  %v585 = vpop.f32.mrb[0].mxu0
  %v586 = vpop.f32.mrb[0].mxu0
  %v587 = vadd.f32 %v91, %v586
  %v588 = vpop.f32.mrb[0].mxu0
  %589 = vmatprep.mubr.bf16.mxu0 0
  %590 = vmatmul.mubr.bf16.gmra.mrb[0].mxu0 %v330
  %v591 = vpop.f32.mrb[0].mxu0
  %v592 = vadd.f32 %v91, %v591
  %v593 = vpop.f32.mrb[0].mxu0
  %v594 = vpop.f32.mrb[0].mxu0
  %v595 = vadd.f32 %v91, %v594
  %v596 = vpop.f32.mrb[0].mxu0
  %597 = vmatprep.mubr.bf16.mxu0 0
  %598 = vmatmul.mubr.bf16.gmra.mrb[0].mxu0 %v333
  %v599 = vpop.f32.mrb[0].mxu0
  %v600 = vadd.f32 %v91, %v599
  %v601 = vpop.f32.mrb[0].mxu0
  %v602 = vpop.f32.mrb[0].mxu0
  %v603 = vadd.f32 %v91, %v602
  %v604 = vpop.f32.mrb[0].mxu0
  %605 = vmatprep.mubr.bf16.mxu0 0
  %606 = vmatmul.mubr.bf16.gmra.mrb[0].mxu0 %v336
  %v607 = vpop.f32.mrb[0].mxu0
  %v608 = vadd.f32 %v91, %v607
  %v609 = vpop.f32.mrb[0].mxu0
  %v610 = vpop.f32.mrb[0].mxu0
  %v611 = vadd.f32 %v91, %v610
  %v612 = vpop.f32.mrb[0].mxu0
  %613 = vmatprep.mubr.bf16.mxu0 0
  %614 = vmatmul.mubr.bf16.gmra.mrb[0].mxu0 %v339
  %v615 = vpop.f32.mrb[0].mxu0
  %v616 = vadd.f32 %v91, %v615
  %v617 = vpop.f32.mrb[0].mxu0
  %v618 = vpop.f32.mrb[0].mxu0
  %v619 = vadd.f32 %v91, %v618
  %v620 = vpop.f32.mrb[0].mxu0
  %621 = vmatprep.mubr.bf16.mxu0 0
  %622 = vmatmul.mubr.bf16.gmra.mrb[0].mxu0 %v342
  %v623 = vpop.f32.mrb[0].mxu0
  %v624 = vadd.f32 %v91, %v623
  %v625 = vpop.f32.mrb[0].mxu0
  %v626 = vpop.f32.mrb[0].mxu0
  %v627 = vadd.f32 %v91, %v626
  %v628 = vpop.f32.mrb[0].mxu0
  %629 = vmatprep.mubr.bf16.mxu0 0
  %630 = vmatmul.mubr.bf16.gmra.mrb[0].mxu0 %v345
  %v631 = vpop.f32.mrb[0].mxu0
  %v632 = vadd.f32 %v91, %v631
  %v633 = vpop.f32.mrb[0].mxu0
  %v634 = vpop.f32.mrb[0].mxu0
  %v635 = vadd.f32 %v91, %v634
  %v636 = vpop.f32.mrb[0].mxu0
  %637 = vmatprep.mubr.bf16.mxu0 0
  %638 = vmatmul.mubr.bf16.gmra.mrb[0].mxu0 %v348
  %v639 = vpop.f32.mrb[0].mxu0
  %v640 = vadd.f32 %v91, %v639
  %v641 = vpop.f32.mrb[0].mxu0
  %v642 = vpop.f32.mrb[0].mxu0
  %v643 = vadd.f32 %v91, %v642
  %v644 = vpop.f32.mrb[0].mxu0
  %645 = vdwg.mxu0
  %vm646 = vcmp.gt.f32.partialorder %v392, 0.0
  %vm647 = vcmp.gt.f32.partialorder %v395, 0.0
  %vm648 = vcmp.gt.f32.partialorder %v400, 0.0
  %vm649 = vcmp.gt.f32.partialorder %v403, 0.0
  %vm650 = vcmp.gt.f32.partialorder %v408, 0.0
  %vm651 = vcmp.gt.f32.partialorder %v411, 0.0
  %vm652 = vcmp.gt.f32.partialorder %v416, 0.0
  %vm653 = vcmp.gt.f32.partialorder %v419, 0.0
  %vm654 = vcmp.gt.f32.partialorder %v424, 0.0
  %vm655 = vcmp.gt.f32.partialorder %v427, 0.0
  %vm656 = vcmp.gt.f32.partialorder %v432, 0.0
  %vm657 = vcmp.gt.f32.partialorder %v435, 0.0
  %vm658 = vcmp.gt.f32.partialorder %v440, 0.0
  %vm659 = vcmp.gt.f32.partialorder %v443, 0.0
  %vm660 = vcmp.gt.f32.partialorder %v448, 0.0
  %vm661 = vcmp.gt.f32.partialorder %v451, 0.0
  %vm662 = vcmp.gt.f32.partialorder %v456, 0.0
  %vm663 = vcmp.gt.f32.partialorder %v459, 0.0
  %vm664 = vcmp.gt.f32.partialorder %v464, 0.0
  %vm665 = vcmp.gt.f32.partialorder %v467, 0.0
  %vm666 = vcmp.gt.f32.partialorder %v472, 0.0
  %vm667 = vcmp.gt.f32.partialorder %v475, 0.0
  %vm668 = vcmp.gt.f32.partialorder %v480, 0.0
  %vm669 = vcmp.gt.f32.partialorder %v483, 0.0
  %vm670 = vcmp.gt.f32.partialorder %v488, 0.0
  %vm671 = vcmp.gt.f32.partialorder %v491, 0.0
  %vm672 = vcmp.gt.f32.partialorder %v496, 0.0
  %vm673 = vcmp.gt.f32.partialorder %v499, 0.0
  %vm674 = vcmp.gt.f32.partialorder %v504, 0.0
  %vm675 = vcmp.gt.f32.partialorder %v507, 0.0
  %vm676 = vcmp.gt.f32.partialorder %v512, 0.0
  %vm677 = vcmp.gt.f32.partialorder %v515, 0.0
  %vm678 = vcmp.gt.f32.partialorder %v520, 0.0
  %vm679 = vcmp.gt.f32.partialorder %v523, 0.0
  %vm680 = vcmp.gt.f32.partialorder %v528, 0.0
  %vm681 = vcmp.gt.f32.partialorder %v531, 0.0
  %vm682 = vcmp.gt.f32.partialorder %v536, 0.0
  %vm683 = vcmp.gt.f32.partialorder %v539, 0.0
  %vm684 = vcmp.gt.f32.partialorder %v544, 0.0
  %vm685 = vcmp.gt.f32.partialorder %v547, 0.0
  %vm686 = vcmp.gt.f32.partialorder %v552, 0.0
  %vm687 = vcmp.gt.f32.partialorder %v555, 0.0
  %vm688 = vcmp.gt.f32.partialorder %v560, 0.0
  %vm689 = vcmp.gt.f32.partialorder %v563, 0.0
  %vm690 = vcmp.gt.f32.partialorder %v568, 0.0
  %vm691 = vcmp.gt.f32.partialorder %v571, 0.0
  %vm692 = vcmp.gt.f32.partialorder %v576, 0.0
  %vm693 = vcmp.gt.f32.partialorder %v579, 0.0
  %vm694 = vcmp.gt.f32.partialorder %v584, 0.0
  %vm695 = vcmp.gt.f32.partialorder %v587, 0.0
  %vm696 = vcmp.gt.f32.partialorder %v592, 0.0
  %vm697 = vcmp.gt.f32.partialorder %v595, 0.0
  %vm698 = vcmp.gt.f32.partialorder %v600, 0.0
  %vm699 = vcmp.gt.f32.partialorder %v603, 0.0
  %vm700 = vcmp.gt.f32.partialorder %v608, 0.0
  %vm701 = vcmp.gt.f32.partialorder %v611, 0.0
  %vm702 = vcmp.gt.f32.partialorder %v616, 0.0
  %vm703 = vcmp.gt.f32.partialorder %v619, 0.0
  %vm704 = vcmp.gt.f32.partialorder %v624, 0.0
  %vm705 = vcmp.gt.f32.partialorder %v627, 0.0
  %vm706 = vcmp.gt.f32.partialorder %v632, 0.0
  %vm707 = vcmp.gt.f32.partialorder %v635, 0.0
  %vm708 = vcmp.gt.f32.partialorder %v640, 0.0
  %vm709 = vcmp.gt.f32.partialorder %v643, 0.0
  %v710 = vmul.f32 %v392, 0.01
  %v711 = vmul.f32 %v395, 0.01
  %v712 = vmul.f32 %v400, 0.01
  %v713 = vmul.f32 %v403, 0.01
  %v714 = vmul.f32 %v408, 0.01
  %v715 = vmul.f32 %v411, 0.01
  %v716 = vmul.f32 %v416, 0.01
  %v717 = vmul.f32 %v419, 0.01
  %v718 = vmul.f32 %v424, 0.01
  %v719 = vmul.f32 %v427, 0.01
  %v720 = vmul.f32 %v432, 0.01
  %v721 = vmul.f32 %v435, 0.01
  %v722 = vmul.f32 %v440, 0.01
  %v723 = vmul.f32 %v443, 0.01
  %v724 = vmul.f32 %v448, 0.01
  %v725 = vmul.f32 %v451, 0.01
  %v726 = vmul.f32 %v456, 0.01
  %v727 = vmul.f32 %v459, 0.01
  %v728 = vmul.f32 %v464, 0.01
  %v729 = vmul.f32 %v467, 0.01
  %v730 = vmul.f32 %v472, 0.01
  %v731 = vmul.f32 %v475, 0.01
  %v732 = vmul.f32 %v480, 0.01
  %v733 = vmul.f32 %v483, 0.01
  %v734 = vmul.f32 %v488, 0.01
  %v735 = vmul.f32 %v491, 0.01
  %v736 = vmul.f32 %v496, 0.01
  %v737 = vmul.f32 %v499, 0.01
  %v738 = vmul.f32 %v504, 0.01
  %v739 = vmul.f32 %v507, 0.01
  %v740 = vmul.f32 %v512, 0.01
  %v741 = vmul.f32 %v515, 0.01
  %v742 = vmul.f32 %v520, 0.01
  %v743 = vmul.f32 %v523, 0.01
  %v744 = vmul.f32 %v528, 0.01
  %v745 = vmul.f32 %v531, 0.01
  %v746 = vmul.f32 %v536, 0.01
  %v747 = vmul.f32 %v539, 0.01
  %v748 = vmul.f32 %v544, 0.01
  %v749 = vmul.f32 %v547, 0.01
  %v750 = vmul.f32 %v552, 0.01
  %v751 = vmul.f32 %v555, 0.01
  %v752 = vmul.f32 %v560, 0.01
  %v753 = vmul.f32 %v563, 0.01
  %v754 = vmul.f32 %v568, 0.01
  %v755 = vmul.f32 %v571, 0.01
  %v756 = vmul.f32 %v576, 0.01
  %v757 = vmul.f32 %v579, 0.01
  %v758 = vmul.f32 %v584, 0.01
  %v759 = vmul.f32 %v587, 0.01
  %v760 = vmul.f32 %v592, 0.01
  %v761 = vmul.f32 %v595, 0.01
  %v762 = vmul.f32 %v600, 0.01
  %v763 = vmul.f32 %v603, 0.01
  %v764 = vmul.f32 %v608, 0.01
  %v765 = vmul.f32 %v611, 0.01
  %v766 = vmul.f32 %v616, 0.01
  %v767 = vmul.f32 %v619, 0.01
  %v768 = vmul.f32 %v624, 0.01
  %v769 = vmul.f32 %v627, 0.01
  %v770 = vmul.f32 %v632, 0.01
  %v771 = vmul.f32 %v635, 0.01
  %v772 = vmul.f32 %v640, 0.01
  %v773 = vmul.f32 %v643, 0.01
  %v774 = vsel %vm646, %v392, %v710
  %v775 = vsel %vm647, %v395, %v711
  %v776 = vsel %vm648, %v400, %v712
  %v777 = vsel %vm649, %v403, %v713
  %v778 = vsel %vm650, %v408, %v714
  %v779 = vsel %vm651, %v411, %v715
  %v780 = vsel %vm652, %v416, %v716
  %v781 = vsel %vm653, %v419, %v717
  %v782 = vsel %vm654, %v424, %v718
  %v783 = vsel %vm655, %v427, %v719
  %v784 = vsel %vm656, %v432, %v720
  %v785 = vsel %vm657, %v435, %v721
  %v786 = vsel %vm658, %v440, %v722
  %v787 = vsel %vm659, %v443, %v723
  %v788 = vsel %vm660, %v448, %v724
  %v789 = vsel %vm661, %v451, %v725
  %v790 = vsel %vm662, %v456, %v726
  %v791 = vsel %vm663, %v459, %v727
  %v792 = vsel %vm664, %v464, %v728
  %v793 = vsel %vm665, %v467, %v729
  %v794 = vsel %vm666, %v472, %v730
  %v795 = vsel %vm667, %v475, %v731
  %v796 = vsel %vm668, %v480, %v732
  %v797 = vsel %vm669, %v483, %v733
  %v798 = vsel %vm670, %v488, %v734
  %v799 = vsel %vm671, %v491, %v735
  %v800 = vsel %vm672, %v496, %v736
  %v801 = vsel %vm673, %v499, %v737
  %v802 = vsel %vm674, %v504, %v738
  %v803 = vsel %vm675, %v507, %v739
  %v804 = vsel %vm676, %v512, %v740
  %v805 = vsel %vm677, %v515, %v741
  %v806 = vsel %vm678, %v520, %v742
  %v807 = vsel %vm679, %v523, %v743
  %v808 = vsel %vm680, %v528, %v744
  %v809 = vsel %vm681, %v531, %v745
  %v810 = vsel %vm682, %v536, %v746
  %v811 = vsel %vm683, %v539, %v747
  %v812 = vsel %vm684, %v544, %v748
  %v813 = vsel %vm685, %v547, %v749
  %v814 = vsel %vm686, %v552, %v750
  %v815 = vsel %vm687, %v555, %v751
  %v816 = vsel %vm688, %v560, %v752
  %v817 = vsel %vm689, %v563, %v753
  %v818 = vsel %vm690, %v568, %v754
  %v819 = vsel %vm691, %v571, %v755
  %v820 = vsel %vm692, %v576, %v756
  %v821 = vsel %vm693, %v579, %v757
  %v822 = vsel %vm694, %v584, %v758
  %v823 = vsel %vm695, %v587, %v759
  %v824 = vsel %vm696, %v592, %v760
  %v825 = vsel %vm697, %v595, %v761
  %v826 = vsel %vm698, %v600, %v762
  %v827 = vsel %vm699, %v603, %v763
  %v828 = vsel %vm700, %v608, %v764
  %v829 = vsel %vm701, %v611, %v765
  %v830 = vsel %vm702, %v616, %v766
  %v831 = vsel %vm703, %v619, %v767
  %v832 = vsel %vm704, %v624, %v768
  %v833 = vsel %vm705, %v627, %v769
  %v834 = vsel %vm706, %v632, %v770
  %v835 = vsel %vm707, %v635, %v771
  %v836 = vsel %vm708, %v640, %v772
  %v837 = vsel %vm709, %v643, %v773
  %v838 = vld [vmem:[%s3] sm:$0x1]
  %v840 = vlaneseq
  %v841 = vshrl.u32 %v840, 7
  %v842 = vsub.s32 0, %v841
  %v843 = vrot.slane %v838, %v842
  %v845 = vmul.f32 %v774, %v843
  %v846 = vmul.f32 %v775, %v843
  %v847 = vmul.f32 %v776, %v843
  %v848 = vmul.f32 %v777, %v843
  %v849 = vmul.f32 %v778, %v843
  %v850 = vmul.f32 %v779, %v843
  %v851 = vmul.f32 %v780, %v843
  %v852 = vmul.f32 %v781, %v843
  %v853 = vmul.f32 %v782, %v843
  %v854 = vmul.f32 %v783, %v843
  %v855 = vmul.f32 %v784, %v843
  %v856 = vmul.f32 %v785, %v843
  %v857 = vmul.f32 %v786, %v843
  %v858 = vmul.f32 %v787, %v843
  %v859 = vmul.f32 %v788, %v843
  %v860 = vmul.f32 %v789, %v843
  %v861 = vmul.f32 %v790, %v843
  %v862 = vmul.f32 %v791, %v843
  %v863 = vmul.f32 %v792, %v843
  %v864 = vmul.f32 %v793, %v843
  %v865 = vmul.f32 %v794, %v843
  %v866 = vmul.f32 %v795, %v843
  %v867 = vmul.f32 %v796, %v843
  %v868 = vmul.f32 %v797, %v843
  %v869 = vmul.f32 %v798, %v843
  %v870 = vmul.f32 %v799, %v843
  %v871 = vmul.f32 %v800, %v843
  %v872 = vmul.f32 %v801, %v843
  %v873 = vmul.f32 %v802, %v843
  %v874 = vmul.f32 %v803, %v843
  %v875 = vmul.f32 %v804, %v843
  %v876 = vmul.f32 %v805, %v843
  %v877 = vmul.f32 %v806, %v843
  %v878 = vmul.f32 %v807, %v843
  %v879 = vmul.f32 %v808, %v843
  %v880 = vmul.f32 %v809, %v843
  %v881 = vmul.f32 %v810, %v843
  %v882 = vmul.f32 %v811, %v843
  %v883 = vmul.f32 %v812, %v843
  %v884 = vmul.f32 %v813, %v843
  %v885 = vmul.f32 %v814, %v843
  %v886 = vmul.f32 %v815, %v843
  %v887 = vmul.f32 %v816, %v843
  %v888 = vmul.f32 %v817, %v843
  %v889 = vmul.f32 %v818, %v843
  %v890 = vmul.f32 %v819, %v843
  %v891 = vmul.f32 %v820, %v843
  %v892 = vmul.f32 %v821, %v843
  %v893 = vmul.f32 %v822, %v843
  %v894 = vmul.f32 %v823, %v843
  %v895 = vmul.f32 %v824, %v843
  %v896 = vmul.f32 %v825, %v843
  %v897 = vmul.f32 %v826, %v843
  %v898 = vmul.f32 %v827, %v843
  %v899 = vmul.f32 %v828, %v843
  %v900 = vmul.f32 %v829, %v843
  %v901 = vmul.f32 %v830, %v843
  %v902 = vmul.f32 %v831, %v843
  %v903 = vmul.f32 %v832, %v843
  %v904 = vmul.f32 %v833, %v843
  %v905 = vmul.f32 %v834, %v843
  %v906 = vmul.f32 %v835, %v843
  %v907 = vmul.f32 %v836, %v843
  %v908 = vmul.f32 %v837, %v843
  %v909 = vld [vmem:[%s4] sm:$0x1]
  %v911 = vlaneseq
  %v912 = vshrl.u32 %v911, 7
  %v913 = vsub.s32 0, %v912
  %v914 = vrot.slane %v909, %v913
  %v916 = vadd.f32 %v845, %v914
  %v917 = vadd.f32 %v846, %v914
  %v918 = vadd.f32 %v847, %v914
  %v919 = vadd.f32 %v848, %v914
  %v920 = vadd.f32 %v849, %v914
  %v921 = vadd.f32 %v850, %v914
  %v922 = vadd.f32 %v851, %v914
  %v923 = vadd.f32 %v852, %v914
  %v924 = vadd.f32 %v853, %v914
  %v925 = vadd.f32 %v854, %v914
  %v926 = vadd.f32 %v855, %v914
  %v927 = vadd.f32 %v856, %v914
  %v928 = vadd.f32 %v857, %v914
  %v929 = vadd.f32 %v858, %v914
  %v930 = vadd.f32 %v859, %v914
  %v931 = vadd.f32 %v860, %v914
  %v932 = vadd.f32 %v861, %v914
  %v933 = vadd.f32 %v862, %v914
  %v934 = vadd.f32 %v863, %v914
  %v935 = vadd.f32 %v864, %v914
  %v936 = vadd.f32 %v865, %v914
  %v937 = vadd.f32 %v866, %v914
  %v938 = vadd.f32 %v867, %v914
  %v939 = vadd.f32 %v868, %v914
  %v940 = vadd.f32 %v869, %v914
  %v941 = vadd.f32 %v870, %v914
  %v942 = vadd.f32 %v871, %v914
  %v943 = vadd.f32 %v872, %v914
  %v944 = vadd.f32 %v873, %v914
  %v945 = vadd.f32 %v874, %v914
  %v946 = vadd.f32 %v875, %v914
  %v947 = vadd.f32 %v876, %v914
  %v948 = vadd.f32 %v877, %v914
  %v949 = vadd.f32 %v878, %v914
  %v950 = vadd.f32 %v879, %v914
  %v951 = vadd.f32 %v880, %v914
  %v952 = vadd.f32 %v881, %v914
  %v953 = vadd.f32 %v882, %v914
  %v954 = vadd.f32 %v883, %v914
  %v955 = vadd.f32 %v884, %v914
  %v956 = vadd.f32 %v885, %v914
  %v957 = vadd.f32 %v886, %v914
  %v958 = vadd.f32 %v887, %v914
  %v959 = vadd.f32 %v888, %v914
  %v960 = vadd.f32 %v889, %v914
  %v961 = vadd.f32 %v890, %v914
  %v962 = vadd.f32 %v891, %v914
  %v963 = vadd.f32 %v892, %v914
  %v964 = vadd.f32 %v893, %v914
  %v965 = vadd.f32 %v894, %v914
  %v966 = vadd.f32 %v895, %v914
  %v967 = vadd.f32 %v896, %v914
  %v968 = vadd.f32 %v897, %v914
  %v969 = vadd.f32 %v898, %v914
  %v970 = vadd.f32 %v899, %v914
  %v971 = vadd.f32 %v900, %v914
  %v972 = vadd.f32 %v901, %v914
  %v973 = vadd.f32 %v902, %v914
  %v974 = vadd.f32 %v903, %v914
  %v975 = vadd.f32 %v904, %v914
  %v976 = vadd.f32 %v905, %v914
  %v977 = vadd.f32 %v906, %v914
  %v978 = vadd.f32 %v907, %v914
  %v979 = vadd.f32 %v908, %v914
  %v980 = vpack.c.bf16 %v917, %v916
  %v981 = vpack.c.bf16 %v919, %v918
  %v982 = vpack.c.bf16 %v921, %v920
  %v983 = vpack.c.bf16 %v923, %v922
  %v984 = vpack.c.bf16 %v925, %v924
  %v985 = vpack.c.bf16 %v927, %v926
  %v986 = vpack.c.bf16 %v929, %v928
  %v987 = vpack.c.bf16 %v931, %v930
  %v988 = vpack.c.bf16 %v933, %v932
  %v989 = vpack.c.bf16 %v935, %v934
  %v990 = vpack.c.bf16 %v937, %v936
  %v991 = vpack.c.bf16 %v939, %v938
  %v992 = vpack.c.bf16 %v941, %v940
  %v993 = vpack.c.bf16 %v943, %v942
  %v994 = vpack.c.bf16 %v945, %v944
  %v995 = vpack.c.bf16 %v947, %v946
  %v996 = vpack.c.bf16 %v949, %v948
  %v997 = vpack.c.bf16 %v951, %v950
  %v998 = vpack.c.bf16 %v953, %v952
  %v999 = vpack.c.bf16 %v955, %v954
  %v1000 = vpack.c.bf16 %v957, %v956
  %v1001 = vpack.c.bf16 %v959, %v958
  %v1002 = vpack.c.bf16 %v961, %v960
  %v1003 = vpack.c.bf16 %v963, %v962
  %v1004 = vpack.c.bf16 %v965, %v964
  %v1005 = vpack.c.bf16 %v967, %v966
  %v1006 = vpack.c.bf16 %v969, %v968
  %v1007 = vpack.c.bf16 %v971, %v970
  %v1008 = vpack.c.bf16 %v973, %v972
  %v1009 = vpack.c.bf16 %v975, %v974
  %v1010 = vpack.c.bf16 %v977, %v976
  %v1011 = vpack.c.bf16 %v979, %v978
  %v1044 = vunpack.c.l.b16 %v980
  %v1045 = vunpack.c.h.b16 %v980
  %v1046 = vunpack.c.l.b16 %v981
  %v1047 = vunpack.c.h.b16 %v981
  %v1048 = vunpack.c.l.b16 %v982
  %v1049 = vunpack.c.h.b16 %v982
  %v1050 = vunpack.c.l.b16 %v983
  %v1051 = vunpack.c.h.b16 %v983
  %v1052 = vunpack.c.l.b16 %v984
  %v1053 = vunpack.c.h.b16 %v984
  %v1054 = vunpack.c.l.b16 %v985
  %v1055 = vunpack.c.h.b16 %v985
  %v1056 = vunpack.c.l.b16 %v986
  %v1057 = vunpack.c.h.b16 %v986
  %v1058 = vunpack.c.l.b16 %v987
  %v1059 = vunpack.c.h.b16 %v987
  %v1060 = vunpack.c.l.b16 %v988
  %v1061 = vunpack.c.h.b16 %v988
  %v1062 = vunpack.c.l.b16 %v989
  %v1063 = vunpack.c.h.b16 %v989
  %v1064 = vunpack.c.l.b16 %v990
  %v1065 = vunpack.c.h.b16 %v990
  %v1066 = vunpack.c.l.b16 %v991
  %v1067 = vunpack.c.h.b16 %v991
  %v1068 = vunpack.c.l.b16 %v992
  %v1069 = vunpack.c.h.b16 %v992
  %v1070 = vunpack.c.l.b16 %v993
  %v1071 = vunpack.c.h.b16 %v993
  %v1072 = vunpack.c.l.b16 %v994
  %v1073 = vunpack.c.h.b16 %v994
  %v1074 = vunpack.c.l.b16 %v995
  %v1075 = vunpack.c.h.b16 %v995
  %v1076 = vunpack.c.l.b16 %v996
  %v1077 = vunpack.c.h.b16 %v996
  %v1078 = vunpack.c.l.b16 %v997
  %v1079 = vunpack.c.h.b16 %v997
  %v1080 = vunpack.c.l.b16 %v998
  %v1081 = vunpack.c.h.b16 %v998
  %v1082 = vunpack.c.l.b16 %v999
  %v1083 = vunpack.c.h.b16 %v999
  %v1084 = vunpack.c.l.b16 %v1000
  %v1085 = vunpack.c.h.b16 %v1000
  %v1086 = vunpack.c.l.b16 %v1001
  %v1087 = vunpack.c.h.b16 %v1001
  %v1088 = vunpack.c.l.b16 %v1002
  %v1089 = vunpack.c.h.b16 %v1002
  %v1090 = vunpack.c.l.b16 %v1003
  %v1091 = vunpack.c.h.b16 %v1003
  %v1092 = vunpack.c.l.b16 %v1004
  %v1093 = vunpack.c.h.b16 %v1004
  %v1094 = vunpack.c.l.b16 %v1005
  %v1095 = vunpack.c.h.b16 %v1005
  %v1096 = vunpack.c.l.b16 %v1006
  %v1097 = vunpack.c.h.b16 %v1006
  %v1098 = vunpack.c.l.b16 %v1007
  %v1099 = vunpack.c.h.b16 %v1007
  %v1100 = vunpack.c.l.b16 %v1008
  %v1101 = vunpack.c.h.b16 %v1008
  %v1102 = vunpack.c.l.b16 %v1009
  %v1103 = vunpack.c.h.b16 %v1009
  %v1104 = vunpack.c.l.b16 %v1010
  %v1105 = vunpack.c.h.b16 %v1010
  %v1106 = vunpack.c.l.b16 %v1011
  %v1107 = vunpack.c.h.b16 %v1011
  %v1108 = vpack.c.b16 %v1044, %v1044
  %v1109 = vpack.c.b16 %v1045, %v1045
  %v1110 = vpack.c.b16 %v1046, %v1046
  %v1111 = vpack.c.b16 %v1047, %v1047
  %v1112 = vpack.c.b16 %v1048, %v1048
  %v1113 = vpack.c.b16 %v1049, %v1049
  %v1114 = vpack.c.b16 %v1050, %v1050
  %v1115 = vpack.c.b16 %v1051, %v1051
  %v1116 = vpack.c.b16 %v1052, %v1052
  %v1117 = vpack.c.b16 %v1053, %v1053
  %v1118 = vpack.c.b16 %v1054, %v1054
  %v1119 = vpack.c.b16 %v1055, %v1055
  %v1120 = vpack.c.b16 %v1056, %v1056
  %v1121 = vpack.c.b16 %v1057, %v1057
  %v1122 = vpack.c.b16 %v1058, %v1058
  %v1123 = vpack.c.b16 %v1059, %v1059
  %v1124 = vpack.c.b16 %v1060, %v1060
  %v1125 = vpack.c.b16 %v1061, %v1061
  %v1126 = vpack.c.b16 %v1062, %v1062
  %v1127 = vpack.c.b16 %v1063, %v1063
  %v1128 = vpack.c.b16 %v1064, %v1064
  %v1129 = vpack.c.b16 %v1065, %v1065
  %v1130 = vpack.c.b16 %v1066, %v1066
  %v1131 = vpack.c.b16 %v1067, %v1067
  %v1132 = vpack.c.b16 %v1068, %v1068
  %v1133 = vpack.c.b16 %v1069, %v1069
  %v1134 = vpack.c.b16 %v1070, %v1070
  %v1135 = vpack.c.b16 %v1071, %v1071
  %v1136 = vpack.c.b16 %v1072, %v1072
  %v1137 = vpack.c.b16 %v1073, %v1073
  %v1138 = vpack.c.b16 %v1074, %v1074
  %v1139 = vpack.c.b16 %v1075, %v1075
  %v1140 = vpack.c.b16 %v1076, %v1076
  %v1141 = vpack.c.b16 %v1077, %v1077
  %v1142 = vpack.c.b16 %v1078, %v1078
  %v1143 = vpack.c.b16 %v1079, %v1079
  %v1144 = vpack.c.b16 %v1080, %v1080
  %v1145 = vpack.c.b16 %v1081, %v1081
  %v1146 = vpack.c.b16 %v1082, %v1082
  %v1147 = vpack.c.b16 %v1083, %v1083
  %v1148 = vpack.c.b16 %v1084, %v1084
  %v1149 = vpack.c.b16 %v1085, %v1085
  %v1150 = vpack.c.b16 %v1086, %v1086
  %v1151 = vpack.c.b16 %v1087, %v1087
  %v1152 = vpack.c.b16 %v1088, %v1088
  %v1153 = vpack.c.b16 %v1089, %v1089
  %v1154 = vpack.c.b16 %v1090, %v1090
  %v1155 = vpack.c.b16 %v1091, %v1091
  %v1156 = vpack.c.b16 %v1092, %v1092
  %v1157 = vpack.c.b16 %v1093, %v1093
  %v1158 = vpack.c.b16 %v1094, %v1094
  %v1159 = vpack.c.b16 %v1095, %v1095
  %v1160 = vpack.c.b16 %v1096, %v1096
  %v1161 = vpack.c.b16 %v1097, %v1097
  %v1162 = vpack.c.b16 %v1098, %v1098
  %v1163 = vpack.c.b16 %v1099, %v1099
  %v1164 = vpack.c.b16 %v1100, %v1100
  %v1165 = vpack.c.b16 %v1101, %v1101
  %v1166 = vpack.c.b16 %v1102, %v1102
  %v1167 = vpack.c.b16 %v1103, %v1103
  %v1168 = vpack.c.b16 %v1104, %v1104
  %v1169 = vpack.c.b16 %v1105, %v1105
  %v1170 = vpack.c.b16 %v1106, %v1106
  %v1171 = vpack.c.b16 %v1107, %v1107
  %vm1236 = vcmask 257024
  %1237 = vst.msk [vmem:[%s5] sm:$0xf] %vm1236, %v1108
  %1238 = vst.msk [vmem:[%s5 + $0x4] sm:$0xf] %vm1236, %v1109
  %1239 = vst.msk [vmem:[%s5 + $0x8] sm:$0xf] %vm1236, %v1110
  %1240 = vst.msk [vmem:[%s5 + $0xc] sm:$0xf] %vm1236, %v1111
  %1241 = vst.msk [vmem:[%s5 + $0x10] sm:$0xf] %vm1236, %v1112
  %1242 = vst.msk [vmem:[%s5 + $0x14] sm:$0xf] %vm1236, %v1113
  %1243 = vst.msk [vmem:[%s5 + $0x18] sm:$0xf] %vm1236, %v1114
  %1244 = vst.msk [vmem:[%s5 + $0x1c] sm:$0xf] %vm1236, %v1115
  %1245 = vst.msk [vmem:[%s5 + $0x20] sm:$0xf] %vm1236, %v1116
  %1246 = vst.msk [vmem:[%s5 + $0x24] sm:$0xf] %vm1236, %v1117
  %1247 = vst.msk [vmem:[%s5 + $0x28] sm:$0xf] %vm1236, %v1118
  %1248 = vst.msk [vmem:[%s5 + $0x2c] sm:$0xf] %vm1236, %v1119
  %1249 = vst.msk [vmem:[%s5 + $0x30] sm:$0xf] %vm1236, %v1120
  %1250 = vst.msk [vmem:[%s5 + $0x34] sm:$0xf] %vm1236, %v1121
  %1251 = vst.msk [vmem:[%s5 + $0x38] sm:$0xf] %vm1236, %v1122
  %1252 = vst.msk [vmem:[%s5 + $0x3c] sm:$0xf] %vm1236, %v1123
  %1253 = vst.msk [vmem:[%s5 + $0x40] sm:$0xf] %vm1236, %v1124
  %1254 = vst.msk [vmem:[%s5 + $0x44] sm:$0xf] %vm1236, %v1125
  %1255 = vst.msk [vmem:[%s5 + $0x48] sm:$0xf] %vm1236, %v1126
  %1256 = vst.msk [vmem:[%s5 + $0x4c] sm:$0xf] %vm1236, %v1127
  %1257 = vst.msk [vmem:[%s5 + $0x50] sm:$0xf] %vm1236, %v1128
  %1258 = vst.msk [vmem:[%s5 + $0x54] sm:$0xf] %vm1236, %v1129
  %1259 = vst.msk [vmem:[%s5 + $0x58] sm:$0xf] %vm1236, %v1130
  %1260 = vst.msk [vmem:[%s5 + $0x5c] sm:$0xf] %vm1236, %v1131
  %1261 = vst.msk [vmem:[%s5 + $0x60] sm:$0xf] %vm1236, %v1132
  %1262 = vst.msk [vmem:[%s5 + $0x64] sm:$0xf] %vm1236, %v1133
  %1263 = vst.msk [vmem:[%s5 + $0x68] sm:$0xf] %vm1236, %v1134
  %1264 = vst.msk [vmem:[%s5 + $0x6c] sm:$0xf] %vm1236, %v1135
  %1265 = vst.msk [vmem:[%s5 + $0x70] sm:$0xf] %vm1236, %v1136
  %1266 = vst.msk [vmem:[%s5 + $0x74] sm:$0xf] %vm1236, %v1137
  %1267 = vst.msk [vmem:[%s5 + $0x78] sm:$0xf] %vm1236, %v1138
  %1268 = vst.msk [vmem:[%s5 + $0x7c] sm:$0xf] %vm1236, %v1139
  %1269 = vst.msk [vmem:[%s5 + $0x80] sm:$0xf] %vm1236, %v1140
  %1270 = vst.msk [vmem:[%s5 + $0x84] sm:$0xf] %vm1236, %v1141
  %1271 = vst.msk [vmem:[%s5 + $0x88] sm:$0xf] %vm1236, %v1142
  %1272 = vst.msk [vmem:[%s5 + $0x8c] sm:$0xf] %vm1236, %v1143
  %1273 = vst.msk [vmem:[%s5 + $0x90] sm:$0xf] %vm1236, %v1144
  %1274 = vst.msk [vmem:[%s5 + $0x94] sm:$0xf] %vm1236, %v1145
  %1275 = vst.msk [vmem:[%s5 + $0x98] sm:$0xf] %vm1236, %v1146
  %1276 = vst.msk [vmem:[%s5 + $0x9c] sm:$0xf] %vm1236, %v1147
  %1277 = vst.msk [vmem:[%s5 + $0xa0] sm:$0xf] %vm1236, %v1148
  %1278 = vst.msk [vmem:[%s5 + $0xa4] sm:$0xf] %vm1236, %v1149
  %1279 = vst.msk [vmem:[%s5 + $0xa8] sm:$0xf] %vm1236, %v1150
  %1280 = vst.msk [vmem:[%s5 + $0xac] sm:$0xf] %vm1236, %v1151
  %1281 = vst.msk [vmem:[%s5 + $0xb0] sm:$0xf] %vm1236, %v1152
  %1282 = vst.msk [vmem:[%s5 + $0xb4] sm:$0xf] %vm1236, %v1153
  %1283 = vst.msk [vmem:[%s5 + $0xb8] sm:$0xf] %vm1236, %v1154
  %1284 = vst.msk [vmem:[%s5 + $0xbc] sm:$0xf] %vm1236, %v1155
  %1285 = vst.msk [vmem:[%s5 + $0xc0] sm:$0xf] %vm1236, %v1156
  %1286 = vst.msk [vmem:[%s5 + $0xc4] sm:$0xf] %vm1236, %v1157
  %1287 = vst.msk [vmem:[%s5 + $0xc8] sm:$0xf] %vm1236, %v1158
  %1288 = vst.msk [vmem:[%s5 + $0xcc] sm:$0xf] %vm1236, %v1159
  %1289 = vst.msk [vmem:[%s5 + $0xd0] sm:$0xf] %vm1236, %v1160
  %1290 = vst.msk [vmem:[%s5 + $0xd4] sm:$0xf] %vm1236, %v1161
  %1291 = vst.msk [vmem:[%s5 + $0xd8] sm:$0xf] %vm1236, %v1162
  %1292 = vst.msk [vmem:[%s5 + $0xdc] sm:$0xf] %vm1236, %v1163
  %1293 = vst.msk [vmem:[%s5 + $0xe0] sm:$0xf] %vm1236, %v1164
  %1294 = vst.msk [vmem:[%s5 + $0xe4] sm:$0xf] %vm1236, %v1165
  %1295 = vst.msk [vmem:[%s5 + $0xe8] sm:$0xf] %vm1236, %v1166
  %1296 = vst.msk [vmem:[%s5 + $0xec] sm:$0xf] %vm1236, %v1167
  %1297 = vst.msk [vmem:[%s5 + $0xf0] sm:$0xf] %vm1236, %v1168
  %1298 = vst.msk [vmem:[%s5 + $0xf4] sm:$0xf] %vm1236, %v1169
  %1299 = vst.msk [vmem:[%s5 + $0xf8] sm:$0xf] %vm1236, %v1170
  %1300 = vst.msk [vmem:[%s5 + $0xfc] sm:$0xf] %vm1236, %v1171
  // Predicated region
  $region22: #{pallas_matmul_fused.1} parent=0 // pred_check
    _
  $region23: #{pallas_matmul_fused.1} parent=0 // pred_check_branch
    %1302 = sbr.rel (0) target = $region25
  $region24: #{pallas_matmul_fused.1} parent=0 // pred_region
    _
  $region25: #{pallas_matmul_fused.1} parent=0 // pred_fallthru
    _
  // Predicated region
  $region26: #{pallas_matmul_fused.1} parent=0 // pred_check
    _
  $region27: #{pallas_matmul_fused.1} parent=0 // pred_check_branch
    %1304 = sbr.rel (0) target = $region29
  $region28: #{pallas_matmul_fused.1} parent=0 // pred_region
    _
  $region29: #{pallas_matmul_fused.1} parent=0 // pred_fallthru
    _

</llo_original>
